<compile_context>
chip_gen: v5e
topology: v5e:2x2
jax: 0.10.0
libtpu: 0.0.40
codegen_flags: <defaults>
</compile_context>

<pallas_src>
import jax
import jax.numpy as jnp
import numpy as np
from jax import lax
from jax.experimental import pallas as pl
from jax.experimental.pallas import tpu as pltpu


# ----------------------------------------------------------------------------
# Kernel
# ----------------------------------------------------------------------------
def _make_decoder_kernel(H, W, Cin, C4, Dout):
    HW = H * W
    f32 = jnp.float32
    bf16 = jnp.bfloat16

    def kernel(x_ref, w1_ref, b1_ref, wd_ref, b2_ref, w3_ref, b3_ref,
               o_ref, s_ref):
        # ---- conv1 (1x1) + folded BN1 + ReLU (bf16 operands, f32 accum) ----
        x2 = x_ref[0]                                               # (HW, Cin) bf16
        t = jnp.dot(x2, w1_ref[...], preferred_element_type=f32)    # (HW, C4) f32
        t = jnp.maximum(t + b1_ref[...], 0.0).astype(bf16)
        t3 = t.reshape(H, W, C4)

        # ---- stage the four 2x2-shifted copies lane-stacked in one scratch.
        # s[i, j] = [t(i,j) | t(i,j+1) | t(i+1,j) | t(i+1,j+1)], OOB = 0.
        # Only the edge strips get zeroed (not the whole scratch).
        s_ref[:, :, 0:C4] = t3
        s_ref[:, 0:W - 1, C4:2 * C4] = t3[:, 1:W, :]
        s_ref[:, W - 1:W, C4:2 * C4] = jnp.zeros((H, 1, C4), bf16)
        s_ref[0:H - 1, :, 2 * C4:3 * C4] = t3[1:H, :, :]
        s_ref[H - 1:H, :, 2 * C4:3 * C4] = jnp.zeros((1, W, C4), bf16)
        s_ref[0:H - 1, 0:W - 1, 3 * C4:4 * C4] = t3[1:H, 1:W, :]
        s_ref[H - 1:H, :, 3 * C4:4 * C4] = jnp.zeros((1, W, C4), bf16)
        s_ref[0:H - 1, W - 1:W, 3 * C4:4 * C4] = jnp.zeros((H - 1, 1, C4), bf16)

        # ---- ConvTranspose2d(3x3, s=2, p=1, op=1): all 4 sub-pixel phases
        # in a single K-stacked matmul; column blocks = phases [ee|eo|oe|oo].
        lhs = s_ref[...].reshape(HW, 4 * C4)                        # bf16
        y = jnp.dot(lhs, wd_ref[...], preferred_element_type=f32)   # (HW, 4*C4)
        y = jnp.maximum(y + b2_ref[...], 0.0).astype(bf16)          # BN2 + ReLU

        # ---- conv3 (1x1) + folded BN3 + ReLU.  Block-diagonal RHS makes the
        # result already px-interleaved: ze[:, px*Dout + d] = z(py=0, px).
        ze = jnp.dot(y[:, 0:2 * C4], w3_ref[...], preferred_element_type=f32)
        ze = jnp.maximum(ze + b3_ref[...], 0.0)                     # even rows
        zo = jnp.dot(y[:, 2 * C4:4 * C4], w3_ref[...], preferred_element_type=f32)
        zo = jnp.maximum(zo + b3_ref[...], 0.0)                     # odd rows

        od = o_ref.dtype
        # (B, H, 2, W, 2*Dout) is contiguous NHWC (B, 2H, 2W, Dout).
        o_ref[0, :, 0:1, :, :] = ze.reshape(H, 1, W, 2 * Dout).astype(od)
        o_ref[0, :, 1:2, :, :] = zo.reshape(H, 1, W, 2 * Dout).astype(od)

    return kernel


# ----------------------------------------------------------------------------
# Wrapper: BN folding + weight packing + pallas_call
# ----------------------------------------------------------------------------
def fold_and_pack_params(p, eps=1e-5):
    """Fold inference-mode BN into the convs and pack weights for the kernel."""
    f32, bf16 = jnp.float32, jnp.bfloat16
    s1 = p["g1"] / jnp.sqrt(p["v1"] + eps)
    s2 = p["g2"] / jnp.sqrt(p["v2"] + eps)
    s3 = p["g3"] / jnp.sqrt(p["v3"] + eps)

    C4 = p["w1"].shape[1]
    Dout = p["w3"].shape[1]

    w1f = (p["w1"] * s1[None, :]).astype(bf16)                      # (Cin, C4)
    b1f = ((p["b1"] - p["m1"]) * s1 + p["beta1"])[None, :].astype(f32)

    wdf = p["wdec"] * s2[None, None, None, :]                       # (3,3,C4,C4)
    Z = jnp.zeros((C4, C4), f32)
    tap = lambda ky, kx: wdf[ky, kx]
    # Rows: LHS window blocks [w00|w01|w10|w11]; cols: phases [ee|eo|oe|oo].
    wd_all = jnp.block([
        [tap(1, 1), tap(1, 2), tap(2, 1), tap(2, 2)],
        [Z,         tap(1, 0), Z,         tap(2, 0)],
        [Z,         Z,         tap(0, 1), tap(0, 2)],
        [Z,         Z,         Z,         tap(0, 0)],
    ]).astype(bf16)                                                 # (4C4, 4C4)
    b2v = (p["bdec"] - p["m2"]) * s2 + p["beta2"]
    b2_all = jnp.tile(b2v, 4)[None, :].astype(f32)                  # (1, 4C4)

    w3f = p["w3"] * s3[None, :]                                     # (C4, Dout)
    Zc = jnp.zeros((C4, Dout), f32)
    w3d = jnp.block([[w3f, Zc], [Zc, w3f]]).astype(bf16)            # (2C4, 2Dout)
    b3v = (p["b3"] - p["m3"]) * s3 + p["beta3"]
    b3d = jnp.concatenate([b3v, b3v])[None, :].astype(f32)          # (1, 2Dout)

    return {"w1": w1f, "b1": b1f, "wd": wd_all, "b2": b2_all,
            "w3": w3d, "b3": b3d}


def decoder_block_forward(x_nhwc, params):
    B, H, W, Cin = x_nhwc.shape
    C4 = params["w1"].shape[1]
    Dout = params["w3"].shape[1]
    HW = H * W

    f = fold_and_pack_params(params)
    x2 = x_nhwc.astype(jnp.bfloat16).reshape(B, HW, Cin)   # bf16: half the DMA
    kernel = _make_decoder_kernel(H, W, Cin, C4, Dout)

    def full_spec(arr):
        # Small folded weights: constant block index => stay resident in VMEM.
        return pl.BlockSpec(arr.shape, lambda b, nd=arr.ndim: (0,) * nd)

    in_specs = [
        pl.BlockSpec((1, HW, Cin), lambda b: (b, 0, 0)),
        full_spec(f["w1"]), full_spec(f["b1"]),
        full_spec(f["wd"]), full_spec(f["b2"]),
        full_spec(f["w3"]), full_spec(f["b3"]),
    ]

    # Explicit scoped-VMEM budget derived from the actual buffer sizes.
    x_blk = HW * Cin * 2
    o_blk = H * 2 * W * 2 * Dout * 4
    wgt = ((Cin * C4 + (4 * C4) ** 2 + 2 * C4 * 2 * Dout) * 2
           + (C4 + 4 * C4 + 2 * Dout) * 4)
    scratch = HW * 4 * C4 * 2
    live = HW * (4 * C4 * 8 + 2 * 2 * Dout * 2 * 4)        # generous
    est = 2 * (x_blk + o_blk) + 2 * wgt + scratch + live
    vmem_limit = int(min(max(2 * est, 32 * 1024 * 1024), 100 * 1024 * 1024))

    out5 = pl.pallas_call(
        kernel,
        out_shape=jax.ShapeDtypeStruct((B, H, 2, W, 2 * Dout), x_nhwc.dtype),
        grid_spec=pltpu.PrefetchScalarGridSpec(
            num_scalar_prefetch=0,
            grid=(B,),
            in_specs=in_specs,
            out_specs=pl.BlockSpec((1, H, 2, W, 2 * Dout),
                                   lambda b: (b, 0, 0, 0, 0)),
            scratch_shapes=[pltpu.VMEM((H, W, 4 * C4), jnp.bfloat16)],
        ),
        compiler_params=pltpu.CompilerParams(
            dimension_semantics=("parallel",),        # disjoint per-batch blocks
            vmem_limit_bytes=vmem_limit),
    )(x2, f["w1"], f["b1"], f["wd"], f["b2"], f["w3"], f["b3"])

    # (B, H, 2, W, 2*Dout) -> (B, 2H, 2W, Dout): contiguous reshape, no copy.
    return out5.reshape(B, 2 * H, 2 * W, Dout)


# ----------------------------------------------------------------------------
# Pure-JAX reference (NHWC, inference-mode BatchNorm) matching the PyTorch module
# ----------------------------------------------------------------------------
def ref_forward(x, p, eps=1e-5):
    hp = lax.Precision.HIGHEST

    def bn(y, g, b, m, v):
        return (y - m) * (g / jnp.sqrt(v + eps)) + b

    h = jnp.einsum("bhwc,cd->bhwd", x, p["w1"], precision=hp) + p["b1"]
    h = jax.nn.relu(bn(h, p["g1"], p["beta1"], p["m1"], p["v1"]))

    # ConvTranspose2d(k=3, s=2, p=1, op=1) == lhs-dilated conv with flipped taps.
    rhs = p["wdec"][::-1, ::-1, :, :]
    y = lax.conv_general_dilated(
        h, rhs, window_strides=(1, 1), padding=((1, 2), (1, 2)),
        lhs_dilation=(2, 2), dimension_numbers=("NHWC", "HWIO", "NHWC"),
        precision=hp) + p["bdec"]
    y = jax.nn.relu(bn(y, p["g2"], p["beta2"], p["m2"], p["v2"]))

    z = jnp.einsum("bhwc,cd->bhwd", y, p["w3"], precision=hp) + p["b3"]
    return jax.nn.relu(bn(z, p["g3"], p["beta3"], p["m3"], p["v3"]))


def make_params(key, in_channels, n_filters):
    C4 = in_channels // 4
    ks = jax.random.split(key, 18)

    def nrm(k, shape, s=0.1):
        return s * jax.random.normal(k, shape, jnp.float32)

    def uni(k, shape):
        return jax.random.uniform(k, shape, jnp.float32, 0.5, 1.5)

    return {
        # conv1: 1x1, (Cin -> C4), weight stored (Cin, C4)
        "w1": nrm(ks[0], (in_channels, C4)), "b1": nrm(ks[1], (C4,)),
        "g1": uni(ks[2], (C4,)), "beta1": nrm(ks[3], (C4,)),
        "m1": nrm(ks[4], (C4,)), "v1": uni(ks[5], (C4,)),
        # deconv2: 3x3, stored (ky, kx, Cin=C4, Cout=C4)  (== torch W[ci,co,ky,kx])
        "wdec": nrm(ks[6], (3, 3, C4, C4)), "bdec": nrm(ks[7], (C4,)),
        "g2": uni(ks[8], (C4,)), "beta2": nrm(ks[9], (C4,)),
        "m2": nrm(ks[10], (C4,)), "v2": uni(ks[11], (C4,)),
        # conv3: 1x1, (C4 -> n_filters)
        "w3": nrm(ks[12], (C4, n_filters)), "b3": nrm(ks[13], (n_filters,)),
        "g3": uni(ks[14], (n_filters,)), "beta3": nrm(ks[15], (n_filters,)),
        "m3": nrm(ks[16], (n_filters,)), "v3": uni(ks[17], (n_filters,)),
    }


if __name__ == "__main__":
    B, in_channels, n_filters, H, W = 2, 32, 16, 16, 16

    key = jax.random.PRNGKey(0)
    kx, kp = jax.random.split(key)
    x = jax.random.normal(kx, (B, H, W, in_channels), jnp.float32)   # NHWC
    params = make_params(kp, in_channels, n_filters)

    out = jax.block_until_ready(decoder_block_forward(x, params))
    ref = jax.block_until_ready(ref_forward(x, params))
    # bf16 MXU operands with f32 accumulation vs. f32 reference.
    np.testing.assert_allclose(np.asarray(out), np.asarray(ref),
                               rtol=3e-2, atol=3e-2)
    print("KERNEL_OK")
</pallas_src>

<mosaic_0001>
module attributes {stable_mosaic.version = 11 : i64} {
  func.func @kernel(%arg0: i32, %arg1: memref<1x256x32xbf16, #tpu.memory_space<vmem>>, %arg2: memref<32x8xbf16, #tpu.memory_space<vmem>>, %arg3: memref<1x8xf32, #tpu.memory_space<vmem>>, %arg4: memref<32x32xbf16, #tpu.memory_space<vmem>>, %arg5: memref<1x32xf32, #tpu.memory_space<vmem>>, %arg6: memref<16x32xbf16, #tpu.memory_space<vmem>>, %arg7: memref<1x32xf32, #tpu.memory_space<vmem>>, %arg8: memref<1x16x2x16x32xf32, #tpu.memory_space<vmem>>, %arg9: memref<16x16x32xbf16, #tpu.memory_space<vmem>>) attributes {dimension_semantics = [#tpu.dimension_semantics<parallel>], iteration_bounds = array<i64: 2>, scalar_prefetch = 0 : i64, scratch_operands = 1 : i64, tpu.core_type = #tpu.core_type<tc>, window_params = [{transform_indices = @transform_0, window_bounds = array<i64: 1, 256, 32>}, {pipeline_mode = #tpu.pipeline_mode<synchronous>, transform_indices = @transform_1, window_bounds = array<i64: 32, 8>}, {pipeline_mode = #tpu.pipeline_mode<synchronous>, transform_indices = @transform_2, window_bounds = array<i64: 1, 8>}, {pipeline_mode = #tpu.pipeline_mode<synchronous>, transform_indices = @transform_3, window_bounds = array<i64: 32, 32>}, {pipeline_mode = #tpu.pipeline_mode<synchronous>, transform_indices = @transform_4, window_bounds = array<i64: 1, 32>}, {pipeline_mode = #tpu.pipeline_mode<synchronous>, transform_indices = @transform_5, window_bounds = array<i64: 16, 32>}, {pipeline_mode = #tpu.pipeline_mode<synchronous>, transform_indices = @transform_6, window_bounds = array<i64: 1, 32>}, {transform_indices = @transform_7, window_bounds = array<i64: 1, 16, 2, 16, 32>}]} {
    %c0 = arith.constant 0 : index
    %c0_0 = arith.constant 0 : index
    %c0_1 = arith.constant 0 : index
    %0 = vector.load %arg1[%c0, %c0_0, %c0_1] : memref<1x256x32xbf16, #tpu.memory_space<vmem>>, vector<1x256x32xbf16>
    %1 = vector.shape_cast %0 : vector<1x256x32xbf16> to vector<256x32xbf16>
    %c0_2 = arith.constant 0 : index
    %c0_3 = arith.constant 0 : index
    %2 = vector.load %arg2[%c0_2, %c0_3] : memref<32x8xbf16, #tpu.memory_space<vmem>>, vector<32x8xbf16>
    %cst = arith.constant dense<0.000000e+00> : vector<256x8xf32>
    %3 = tpu.matmul %1, %2, %cst {dimension_numbers = #tpu.dot_dimension_numbers<[1], [0], [0], [1], [0, 0, 1, 1], [], []>} : vector<256x32xbf16>, vector<32x8xbf16>, vector<256x8xf32> -> vector<256x8xf32>
    %c0_4 = arith.constant 0 : index
    %c0_5 = arith.constant 0 : index
    %4 = vector.load %arg3[%c0_4, %c0_5] : memref<1x8xf32, #tpu.memory_space<vmem>>, vector<1x8xf32>
    %5 = vector.broadcast %4 : vector<1x8xf32> to vector<256x8xf32>
    %6 = arith.addf %3, %5 : vector<256x8xf32>
    %cst_6 = arith.constant 0.000000e+00 : f32
    %7 = vector.broadcast %cst_6 : f32 to vector<256x8xf32>
    %8 = arith.maximumf %6, %7 : vector<256x8xf32>
    %9 = arith.truncf %8 : vector<256x8xf32> to vector<256x8xbf16>
    %10 = vector.shape_cast %9 : vector<256x8xbf16> to vector<16x16x8xbf16>
    %c0_7 = arith.constant 0 : index
    %c0_8 = arith.constant 0 : index
    %c0_9 = arith.constant 0 : index
    %11 = vector.load %arg9[%c0_7, %c0_8, %c0_9] : memref<16x16x32xbf16, #tpu.memory_space<vmem>>, vector<16x16x8xbf16>
    tpu.vector_store %arg9[%c0_7, %c0_8, %c0_9], %10 {strides = array<i32>} : memref<16x16x32xbf16, #tpu.memory_space<vmem>>, vector<16x16x8xbf16>,
    %12 = vector.extract_strided_slice %10 {offsets = [0, 1, 0], sizes = [16, 15, 8], strides = [1, 1, 1]} : vector<16x16x8xbf16> to vector<16x15x8xbf16>
    %c0_10 = arith.constant 0 : index
    %c0_11 = arith.constant 0 : index
    %c8 = arith.constant 8 : index
    %13 = vector.load %arg9[%c0_10, %c0_11, %c8] : memref<16x16x32xbf16, #tpu.memory_space<vmem>>, vector<16x15x8xbf16>
    tpu.vector_store %arg9[%c0_10, %c0_11, %c8], %12 {strides = array<i32>} : memref<16x16x32xbf16, #tpu.memory_space<vmem>>, vector<16x15x8xbf16>,
    %cst_12 = arith.constant 0.000000e+00 : bf16
    %14 = vector.broadcast %cst_12 : bf16 to vector<16x1x8xbf16>
    %c0_13 = arith.constant 0 : index
    %c15 = arith.constant 15 : index
    %c8_14 = arith.constant 8 : index
    %15 = vector.load %arg9[%c0_13, %c15, %c8_14] : memref<16x16x32xbf16, #tpu.memory_space<vmem>>, vector<16x1x8xbf16>
    tpu.vector_store %arg9[%c0_13, %c15, %c8_14], %14 {strides = array<i32>} : memref<16x16x32xbf16, #tpu.memory_space<vmem>>, vector<16x1x8xbf16>,
    %16 = vector.extract_strided_slice %10 {offsets = [1, 0, 0], sizes = [15, 16, 8], strides = [1, 1, 1]} : vector<16x16x8xbf16> to vector<15x16x8xbf16>
    %c0_15 = arith.constant 0 : index
    %c0_16 = arith.constant 0 : index
    %c16 = arith.constant 16 : index
    %17 = vector.load %arg9[%c0_15, %c0_16, %c16] : memref<16x16x32xbf16, #tpu.memory_space<vmem>>, vector<15x16x8xbf16>
    tpu.vector_store %arg9[%c0_15, %c0_16, %c16], %16 {strides = array<i32>} : memref<16x16x32xbf16, #tpu.memory_space<vmem>>, vector<15x16x8xbf16>,
    %cst_17 = arith.constant 0.000000e+00 : bf16
    %18 = vector.broadcast %cst_17 : bf16 to vector<1x16x8xbf16>
    %c15_18 = arith.constant 15 : index
    %c0_19 = arith.constant 0 : index
    %c16_20 = arith.constant 16 : index
    %19 = vector.load %arg9[%c15_18, %c0_19, %c16_20] : memref<16x16x32xbf16, #tpu.memory_space<vmem>>, vector<1x16x8xbf16>
    tpu.vector_store %arg9[%c15_18, %c0_19, %c16_20], %18 {strides = array<i32>} : memref<16x16x32xbf16, #tpu.memory_space<vmem>>, vector<1x16x8xbf16>,
    %20 = vector.extract_strided_slice %10 {offsets = [1, 1, 0], sizes = [15, 15, 8], strides = [1, 1, 1]} : vector<16x16x8xbf16> to vector<15x15x8xbf16>
    %c0_21 = arith.constant 0 : index
    %c0_22 = arith.constant 0 : index
    %c24 = arith.constant 24 : index
    %21 = vector.load %arg9[%c0_21, %c0_22, %c24] : memref<16x16x32xbf16, #tpu.memory_space<vmem>>, vector<15x15x8xbf16>
    tpu.vector_store %arg9[%c0_21, %c0_22, %c24], %20 {strides = array<i32>} : memref<16x16x32xbf16, #tpu.memory_space<vmem>>, vector<15x15x8xbf16>,
    %cst_23 = arith.constant 0.000000e+00 : bf16
    %22 = vector.broadcast %cst_23 : bf16 to vector<1x16x8xbf16>
    %c15_24 = arith.constant 15 : index
    %c0_25 = arith.constant 0 : index
    %c24_26 = arith.constant 24 : index
    %23 = vector.load %arg9[%c15_24, %c0_25, %c24_26] : memref<16x16x32xbf16, #tpu.memory_space<vmem>>, vector<1x16x8xbf16>
    tpu.vector_store %arg9[%c15_24, %c0_25, %c24_26], %22 {strides = array<i32>} : memref<16x16x32xbf16, #tpu.memory_space<vmem>>, vector<1x16x8xbf16>,
    %cst_27 = arith.constant 0.000000e+00 : bf16
    %24 = vector.broadcast %cst_27 : bf16 to vector<15x1x8xbf16>
    %c0_28 = arith.constant 0 : index
    %c15_29 = arith.constant 15 : index
    %c24_30 = arith.constant 24 : index
    %25 = vector.load %arg9[%c0_28, %c15_29, %c24_30] : memref<16x16x32xbf16, #tpu.memory_space<vmem>>, vector<15x1x8xbf16>
    tpu.vector_store %arg9[%c0_28, %c15_29, %c24_30], %24 {strides = array<i32>} : memref<16x16x32xbf16, #tpu.memory_space<vmem>>, vector<15x1x8xbf16>,
    %c0_31 = arith.constant 0 : index
    %c0_32 = arith.constant 0 : index
    %c0_33 = arith.constant 0 : index
    %26 = vector.load %arg9[%c0_31, %c0_32, %c0_33] : memref<16x16x32xbf16, #tpu.memory_space<vmem>>, vector<16x16x32xbf16>
    %27 = vector.shape_cast %26 : vector<16x16x32xbf16> to vector<256x32xbf16>
    %c0_34 = arith.constant 0 : index
    %c0_35 = arith.constant 0 : index
    %28 = vector.load %arg4[%c0_34, %c0_35] : memref<32x32xbf16, #tpu.memory_space<vmem>>, vector<32x32xbf16>
    %cst_36 = arith.constant dense<0.000000e+00> : vector<256x32xf32>
    %29 = tpu.matmul %27, %28, %cst_36 {dimension_numbers = #tpu.dot_dimension_numbers<[1], [0], [0], [1], [0, 0, 1, 1], [], []>} : vector<256x32xbf16>, vector<32x32xbf16>, vector<256x32xf32> -> vector<256x32xf32>
    %c0_37 = arith.constant 0 : index
    %c0_38 = arith.constant 0 : index
    %30 = vector.load %arg5[%c0_37, %c0_38] : memref<1x32xf32, #tpu.memory_space<vmem>>, vector<1x32xf32>
    %31 = vector.broadcast %30 : vector<1x32xf32> to vector<256x32xf32>
    %32 = arith.addf %29, %31 : vector<256x32xf32>
    %cst_39 = arith.constant 0.000000e+00 : f32
    %33 = vector.broadcast %cst_39 : f32 to vector<256x32xf32>
    %34 = arith.maximumf %32, %33 : vector<256x32xf32>
    %35 = arith.truncf %34 : vector<256x32xf32> to vector<256x32xbf16>
    %36 = vector.extract_strided_slice %35 {offsets = [0, 0], sizes = [256, 16], strides = [1, 1]} : vector<256x32xbf16> to vector<256x16xbf16>
    %c0_40 = arith.constant 0 : index
    %c0_41 = arith.constant 0 : index
    %37 = vector.load %arg6[%c0_40, %c0_41] : memref<16x32xbf16, #tpu.memory_space<vmem>>, vector<16x32xbf16>
    %cst_42 = arith.constant dense<0.000000e+00> : vector<256x32xf32>
    %38 = tpu.matmul %36, %37, %cst_42 {dimension_numbers = #tpu.dot_dimension_numbers<[1], [0], [0], [1], [0, 0, 1, 1], [], []>} : vector<256x16xbf16>, vector<16x32xbf16>, vector<256x32xf32> -> vector<256x32xf32>
    %c0_43 = arith.constant 0 : index
    %c0_44 = arith.constant 0 : index
    %39 = vector.load %arg7[%c0_43, %c0_44] : memref<1x32xf32, #tpu.memory_space<vmem>>, vector<1x32xf32>
    %40 = vector.broadcast %39 : vector<1x32xf32> to vector<256x32xf32>
    %41 = arith.addf %38, %40 : vector<256x32xf32>
    %cst_45 = arith.constant 0.000000e+00 : f32
    %42 = vector.broadcast %cst_45 : f32 to vector<256x32xf32>
    %43 = arith.maximumf %41, %42 : vector<256x32xf32>
    %44 = vector.extract_strided_slice %35 {offsets = [0, 16], sizes = [256, 16], strides = [1, 1]} : vector<256x32xbf16> to vector<256x16xbf16>
    %c0_46 = arith.constant 0 : index
    %c0_47 = arith.constant 0 : index
    %45 = vector.load %arg6[%c0_46, %c0_47] : memref<16x32xbf16, #tpu.memory_space<vmem>>, vector<16x32xbf16>
    %cst_48 = arith.constant dense<0.000000e+00> : vector<256x32xf32>
    %46 = tpu.matmul %44, %45, %cst_48 {dimension_numbers = #tpu.dot_dimension_numbers<[1], [0], [0], [1], [0, 0, 1, 1], [], []>} : vector<256x16xbf16>, vector<16x32xbf16>, vector<256x32xf32> -> vector<256x32xf32>
    %c0_49 = arith.constant 0 : index
    %c0_50 = arith.constant 0 : index
    %47 = vector.load %arg7[%c0_49, %c0_50] : memref<1x32xf32, #tpu.memory_space<vmem>>, vector<1x32xf32>
    %48 = vector.broadcast %47 : vector<1x32xf32> to vector<256x32xf32>
    %49 = arith.addf %46, %48 : vector<256x32xf32>
    %cst_51 = arith.constant 0.000000e+00 : f32
    %50 = vector.broadcast %cst_51 : f32 to vector<256x32xf32>
    %51 = arith.maximumf %49, %50 : vector<256x32xf32>
    %52 = vector.shape_cast %43 : vector<256x32xf32> to vector<16x1x16x32xf32>
    %c0_52 = arith.constant 0 : index
    %c0_53 = arith.constant 0 : index
    %c0_54 = arith.constant 0 : index
    %c0_55 = arith.constant 0 : index
    %c0_56 = arith.constant 0 : index
    %53 = vector.load %arg8[%c0_52, %c0_53, %c0_54, %c0_55, %c0_56] : memref<1x16x2x16x32xf32, #tpu.memory_space<vmem>>, vector<1x16x1x16x32xf32>
    %54 = vector.shape_cast %53 : vector<1x16x1x16x32xf32> to vector<16x1x16x32xf32>
    %55 = vector.shape_cast %52 : vector<16x1x16x32xf32> to vector<1x16x1x16x32xf32>
    tpu.vector_store %arg8[%c0_52, %c0_53, %c0_54, %c0_55, %c0_56], %55 {strides = array<i32>} : memref<1x16x2x16x32xf32, #tpu.memory_space<vmem>>, vector<1x16x1x16x32xf32>,
    %56 = vector.shape_cast %51 : vector<256x32xf32> to vector<16x1x16x32xf32>
    %c0_57 = arith.constant 0 : index
    %c0_58 = arith.constant 0 : index
    %c1 = arith.constant 1 : index
    %c0_59 = arith.constant 0 : index
    %c0_60 = arith.constant 0 : index
    %57 = vector.load %arg8[%c0_57, %c0_58, %c1, %c0_59, %c0_60] : memref<1x16x2x16x32xf32, #tpu.memory_space<vmem>>, vector<1x16x1x16x32xf32>
    %58 = vector.shape_cast %57 : vector<1x16x1x16x32xf32> to vector<16x1x16x32xf32>
    %59 = vector.shape_cast %56 : vector<16x1x16x32xf32> to vector<1x16x1x16x32xf32>
    tpu.vector_store %arg8[%c0_57, %c0_58, %c1, %c0_59, %c0_60], %59 {strides = array<i32>} : memref<1x16x2x16x32xf32, #tpu.memory_space<vmem>>, vector<1x16x1x16x32xf32>,
    return
  }
  func.func @transform_0(%arg0: i32) -> (i32, i32, i32) {
    %c0_i32 = arith.constant 0 : i32
    %c0_i32_0 = arith.constant 0 : i32
    %c0_i32_1 = arith.constant 0 : i32
    return %arg0, %c0_i32, %c0_i32_0 : i32, i32, i32
  }
  func.func @transform_1(%arg0: i32) -> (i32, i32) {
    %c0_i32 = arith.constant 0 : i32
    %c0_i32_0 = arith.constant 0 : i32
    %c0_i32_1 = arith.constant 0 : i32
    return %c0_i32, %c0_i32_0 : i32, i32
  }
  func.func @transform_2(%arg0: i32) -> (i32, i32) {
    %c0_i32 = arith.constant 0 : i32
    %c0_i32_0 = arith.constant 0 : i32
    %c0_i32_1 = arith.constant 0 : i32
    return %c0_i32, %c0_i32_0 : i32, i32
  }
  func.func @transform_3(%arg0: i32) -> (i32, i32) {
    %c0_i32 = arith.constant 0 : i32
    %c0_i32_0 = arith.constant 0 : i32
    %c0_i32_1 = arith.constant 0 : i32
    return %c0_i32, %c0_i32_0 : i32, i32
  }
  func.func @transform_4(%arg0: i32) -> (i32, i32) {
    %c0_i32 = arith.constant 0 : i32
    %c0_i32_0 = arith.constant 0 : i32
    %c0_i32_1 = arith.constant 0 : i32
    return %c0_i32, %c0_i32_0 : i32, i32
  }
  func.func @transform_5(%arg0: i32) -> (i32, i32) {
    %c0_i32 = arith.constant 0 : i32
    %c0_i32_0 = arith.constant 0 : i32
    %c0_i32_1 = arith.constant 0 : i32
    return %c0_i32, %c0_i32_0 : i32, i32
  }
  func.func @transform_6(%arg0: i32) -> (i32, i32) {
    %c0_i32 = arith.constant 0 : i32
    %c0_i32_0 = arith.constant 0 : i32
    %c0_i32_1 = arith.constant 0 : i32
    return %c0_i32, %c0_i32_0 : i32, i32
  }
  func.func @transform_7(%arg0: i32) -> (i32, i32, i32, i32, i32) {
    %c0_i32 = arith.constant 0 : i32
    %c0_i32_0 = arith.constant 0 : i32
    %c0_i32_1 = arith.constant 0 : i32
    %c0_i32_2 = arith.constant 0 : i32
    %c0_i32_3 = arith.constant 0 : i32
    return %arg0, %c0_i32, %c0_i32_0, %c0_i32_1, %c0_i32_2 : i32, i32, i32, i32, i32
  }
}

</mosaic_0001>

<llo_original>
// kernel: tpu_custom_call.1
$region0: #{tpu_custom_call.1}
  #allocation0 [shape = 'u32[]', space=smem, size = 0x4, offset = 0x4, fixed_abs, tag = 'smem constant byte address 0x4 - core index']
  #allocation1 [shape = 'u32[72,128]{1,0:T(1,128)}', space=vmem, size = 0x9000, scoped, tag = 'internal scratch']
  #allocation2 [shape = 'bf16[16,16,32]{2,1,0:T(8,128)(2,1)}', space=vmem, size = 0x10000, scoped, tag = 'scratch operand']
  %s0 = inlined_call_operand.vmem [shape: bf16[2,256,32], index: 0, kind: input, shape index: {}]
  %s1 = inlined_call_operand.vmem [shape: bf16[32,8], index: 1, kind: input, shape index: {}]
  %s2 = inlined_call_operand.vmem [shape: f32[1,8], index: 2, kind: input, shape index: {}]
  %s3 = inlined_call_operand.vmem [shape: bf16[32,32], index: 3, kind: input, shape index: {}]
  %s4 = inlined_call_operand.vmem [shape: f32[1,32], index: 4, kind: input, shape index: {}]
  %s5 = inlined_call_operand.vmem [shape: bf16[16,32], index: 5, kind: input, shape index: {}]
  %s6 = inlined_call_operand.vmem [shape: f32[1,32], index: 6, kind: input, shape index: {}]
  %s7 = inlined_call_operand.hbm [shape: f32[2,16,2,16,32], index: 7, kind: output, shape index: {}]
  %s8 = sld [smem:[#allocation0]]
  $region61: #{tpu_custom_call.1} parent=0
    _
  %s10 = ssub.s32 1, %s8
  %s11 = scalar_select 0, %s10, %s8
  $region1: #{tpu_custom_call.1} parent=0
    #allocation3 [shape = 'u8[524288]{0}', space=vmem, size = 0x80000, scoped, tag = 'output window, operand 0']
    #allocation4 [shape = 's32[2]{0}', space=sflag, size = 0x8, scoped, tag = 'scoped memory for tpu_custom_call.1']
    %12 = vsyncpa [#allocation4], 0
    %s13 = scalar_lea.sflag [#allocation4], 1
    %14 = vsyncpa %s13, 0
    loop: start=0, step=1, limit=4
    $region2: #{tpu_custom_call.1} parent=1 // loop_pre_header
      _
    $region3: #{tpu_custom_call.1} parent=1 // loop_header
      %s16 = sphi 0, %s20
      %p17 = scmp.ge.s32.totalorder %s16, 4
      %s26 = sphi 0, %s28
      %s29 = sphi 0, %s26
      %s30 = sphi 0, %s29
      %s46 = sphi 0, %s30
      %s50 = sphi 0, %s50
      %s52 = sphi 0, %s50
      %s53 = sphi 0, %s52
      %s67 = sphi 0, %s53
      %s71 = sphi 0, %s71
      %s73 = sphi 0, %s71
      %s74 = sphi 0, %s73
      %s88 = sphi 0, %s74
      %s92 = sphi 0, %s92
      %s94 = sphi 0, %s92
      %s95 = sphi 0, %s94
      %s109 = sphi 0, %s95
      %s113 = sphi 0, %s113
      %s115 = sphi 0, %s113
      %s116 = sphi 0, %s115
      %s130 = sphi 0, %s116
      %s134 = sphi 0, %s134
      %s136 = sphi 0, %s134
      %s137 = sphi 0, %s136
      %s151 = sphi 0, %s137
      %s155 = sphi 0, %s155
      %s157 = sphi 0, %s155
      %s158 = sphi 0, %s157
      %s172 = sphi 0, %s158
      %s178 = sphi 0, %s180
      %s181 = sphi 0, %s178
      %s182 = sphi 0, %s181
      %s198 = sphi 0, %s182
    $region4: #{tpu_custom_call.1} parent=1 // loop_header_branch
      %19 = sbr.rel (%p17) target = $region8
    $region5: #{tpu_custom_call.1} parent=1 // loop_body
      %s21 = ssub.s32 %s16, 1
      %s22 = ssub.s32 %s16, 2
      %s23 = sadd.s32 %s16, 1
      %s24 = ssub.s32 %s16, %s23
      %p25 = scmp.eq.s32.totalorder %s24, 0
      %s27 = sadd.s32 %s26, 1
      %s28 = scalar_select %p25, %s26, %s27
      %p31 = pneg %p25
      %p32 = scmp.eq.s32.totalorder %s16, 1
      %p33 = por %p31, %p32
      %p34 = scmp.ne.s32.totalorder %s26, %s29
      %p35 = scmp.eq.s32.totalorder %s16, 0
      %p36 = por %p34, %p35
      %p37 = scmp.ne.s32.totalorder %s26, %s29
      %p38 = scmp.eq.s32.totalorder %s21, 1
      %p39 = por %p37, %p38
      %p40 = scmp.ne.s32.totalorder %s29, %s30
      %p41 = scmp.eq.s32.totalorder %s21, 0
      %p42 = por %p40, %p41
      %p43 = scmp.ne.s32.totalorder %s29, %s30
      %p44 = scmp.eq.s32.totalorder %s22, 1
      %p45 = por %p43, %p44
      %p47 = scmp.ne.s32.totalorder %s30, %s46
      %p48 = scmp.eq.s32.totalorder %s22, 0
      %p49 = por %p47, %p48
      %s51 = sadd.s32 %s50, 1
      %p54 = scmp.eq.s32.totalorder %s16, 1
      %p55 = scmp.ne.s32.totalorder %s50, %s52
      %p56 = scmp.eq.s32.totalorder %s16, 0
      %p57 = por %p55, %p56
      %p58 = scmp.ne.s32.totalorder %s50, %s52
      %p59 = scmp.eq.s32.totalorder %s21, 1
      %p60 = por %p58, %p59
      %p61 = scmp.ne.s32.totalorder %s52, %s53
      %p62 = scmp.eq.s32.totalorder %s21, 0
      %p63 = por %p61, %p62
      %p64 = scmp.ne.s32.totalorder %s52, %s53
      %p65 = scmp.eq.s32.totalorder %s22, 1
      %p66 = por %p64, %p65
      %p68 = scmp.ne.s32.totalorder %s53, %s67
      %p69 = scmp.eq.s32.totalorder %s22, 0
      %p70 = por %p68, %p69
      %s72 = sadd.s32 %s71, 1
      %p75 = scmp.eq.s32.totalorder %s16, 1
      %p76 = scmp.ne.s32.totalorder %s71, %s73
      %p77 = scmp.eq.s32.totalorder %s16, 0
      %p78 = por %p76, %p77
      %p79 = scmp.ne.s32.totalorder %s71, %s73
      %p80 = scmp.eq.s32.totalorder %s21, 1
      %p81 = por %p79, %p80
      %p82 = scmp.ne.s32.totalorder %s73, %s74
      %p83 = scmp.eq.s32.totalorder %s21, 0
      %p84 = por %p82, %p83
      %p85 = scmp.ne.s32.totalorder %s73, %s74
      %p86 = scmp.eq.s32.totalorder %s22, 1
      %p87 = por %p85, %p86
      %p89 = scmp.ne.s32.totalorder %s74, %s88
      %p90 = scmp.eq.s32.totalorder %s22, 0
      %p91 = por %p89, %p90
      %s93 = sadd.s32 %s92, 1
      %p96 = scmp.eq.s32.totalorder %s16, 1
      %p97 = scmp.ne.s32.totalorder %s92, %s94
      %p98 = scmp.eq.s32.totalorder %s16, 0
      %p99 = por %p97, %p98
      %p100 = scmp.ne.s32.totalorder %s92, %s94
      %p101 = scmp.eq.s32.totalorder %s21, 1
      %p102 = por %p100, %p101
      %p103 = scmp.ne.s32.totalorder %s94, %s95
      %p104 = scmp.eq.s32.totalorder %s21, 0
      %p105 = por %p103, %p104
      %p106 = scmp.ne.s32.totalorder %s94, %s95
      %p107 = scmp.eq.s32.totalorder %s22, 1
      %p108 = por %p106, %p107
      %p110 = scmp.ne.s32.totalorder %s95, %s109
      %p111 = scmp.eq.s32.totalorder %s22, 0
      %p112 = por %p110, %p111
      %s114 = sadd.s32 %s113, 1
      %p117 = scmp.eq.s32.totalorder %s16, 1
      %p118 = scmp.ne.s32.totalorder %s113, %s115
      %p119 = scmp.eq.s32.totalorder %s16, 0
      %p120 = por %p118, %p119
      %p121 = scmp.ne.s32.totalorder %s113, %s115
      %p122 = scmp.eq.s32.totalorder %s21, 1
      %p123 = por %p121, %p122
      %p124 = scmp.ne.s32.totalorder %s115, %s116
      %p125 = scmp.eq.s32.totalorder %s21, 0
      %p126 = por %p124, %p125
      %p127 = scmp.ne.s32.totalorder %s115, %s116
      %p128 = scmp.eq.s32.totalorder %s22, 1
      %p129 = por %p127, %p128
      %p131 = scmp.ne.s32.totalorder %s116, %s130
      %p132 = scmp.eq.s32.totalorder %s22, 0
      %p133 = por %p131, %p132
      %s135 = sadd.s32 %s134, 1
      %p138 = scmp.eq.s32.totalorder %s16, 1
      %p139 = scmp.ne.s32.totalorder %s134, %s136
      %p140 = scmp.eq.s32.totalorder %s16, 0
      %p141 = por %p139, %p140
      %p142 = scmp.ne.s32.totalorder %s134, %s136
      %p143 = scmp.eq.s32.totalorder %s21, 1
      %p144 = por %p142, %p143
      %p145 = scmp.ne.s32.totalorder %s136, %s137
      %p146 = scmp.eq.s32.totalorder %s21, 0
      %p147 = por %p145, %p146
      %p148 = scmp.ne.s32.totalorder %s136, %s137
      %p149 = scmp.eq.s32.totalorder %s22, 1
      %p150 = por %p148, %p149
      %p152 = scmp.ne.s32.totalorder %s137, %s151
      %p153 = scmp.eq.s32.totalorder %s22, 0
      %p154 = por %p152, %p153
      %s156 = sadd.s32 %s155, 1
      %p159 = scmp.eq.s32.totalorder %s16, 1
      %p160 = scmp.ne.s32.totalorder %s155, %s157
      %p161 = scmp.eq.s32.totalorder %s16, 0
      %p162 = por %p160, %p161
      %p163 = scmp.ne.s32.totalorder %s155, %s157
      %p164 = scmp.eq.s32.totalorder %s21, 1
      %p165 = por %p163, %p164
      %p166 = scmp.ne.s32.totalorder %s157, %s158
      %p167 = scmp.eq.s32.totalorder %s21, 0
      %p168 = por %p166, %p167
      %p169 = scmp.ne.s32.totalorder %s157, %s158
      %p170 = scmp.eq.s32.totalorder %s22, 1
      %p171 = por %p169, %p170
      %p173 = scmp.ne.s32.totalorder %s158, %s172
      %p174 = scmp.eq.s32.totalorder %s22, 0
      %p175 = por %p173, %p174
      %s176 = ssub.s32 %s16, %s23
      %p177 = scmp.eq.s32.totalorder %s176, 0
      %s179 = sadd.s32 %s178, 1
      %s180 = scalar_select %p177, %s178, %s179
      %p183 = pneg %p177
      %p184 = scmp.eq.s32.totalorder %s16, 1
      %p185 = por %p183, %p184
      %p186 = scmp.ne.s32.totalorder %s178, %s181
      %p187 = scmp.eq.s32.totalorder %s16, 0
      %p188 = por %p186, %p187
      %p189 = scmp.ne.s32.totalorder %s178, %s181
      %p190 = scmp.eq.s32.totalorder %s21, 1
      %p191 = por %p189, %p190
      %p192 = scmp.ne.s32.totalorder %s181, %s182
      %p193 = scmp.eq.s32.totalorder %s21, 0
      %p194 = por %p192, %p193
      %p195 = scmp.ne.s32.totalorder %s181, %s182
      %p196 = scmp.eq.s32.totalorder %s22, 1
      %p197 = por %p195, %p196
      %p199 = scmp.ne.s32.totalorder %s182, %s198
      %p200 = scmp.eq.s32.totalorder %s22, 0
      %p201 = por %p199, %p200
      %p202 = scmp.le.s32.totalorder 1, %s16
      %p203 = scmp.lt.s32.totalorder %s16, 3
      %p204 = pnand %p202, %p203
      %p205 = pneg %p204
      // Predicated region
      $region9: #{tpu_custom_call.1} parent=5 // pred_check
        _
      $region10: #{tpu_custom_call.1} parent=5 // pred_check_branch
        %207 = sbr.rel (%p204) target = $region12
      $region11: #{tpu_custom_call.1} parent=5 // pred_region
        %s208 = ssub.s32 %s16, 1
        // Predicated region
        $region13: #{tpu_custom_call.1} parent=11 // pred_check
          %p209 = pneg %p63
        $region14: #{tpu_custom_call.1} parent=11 // pred_check_branch
          %211 = sbr.rel (%p209) target = $region16
        $region15: #{tpu_custom_call.1} parent=11 // pred_region
          _
        $region16: #{tpu_custom_call.1} parent=11 // pred_fallthru
          _
        // Predicated region
        $region17: #{tpu_custom_call.1} parent=11 // pred_check
          %p212 = pneg %p84
        $region18: #{tpu_custom_call.1} parent=11 // pred_check_branch
          %214 = sbr.rel (%p212) target = $region20
        $region19: #{tpu_custom_call.1} parent=11 // pred_region
          _
        $region20: #{tpu_custom_call.1} parent=11 // pred_fallthru
          _
        // Predicated region
        $region21: #{tpu_custom_call.1} parent=11 // pred_check
          %p215 = pneg %p105
        $region22: #{tpu_custom_call.1} parent=11 // pred_check_branch
          %217 = sbr.rel (%p215) target = $region24
        $region23: #{tpu_custom_call.1} parent=11 // pred_region
          _
        $region24: #{tpu_custom_call.1} parent=11 // pred_fallthru
          _
        // Predicated region
        $region25: #{tpu_custom_call.1} parent=11 // pred_check
          %p218 = pneg %p126
        $region26: #{tpu_custom_call.1} parent=11 // pred_check_branch
          %220 = sbr.rel (%p218) target = $region28
        $region27: #{tpu_custom_call.1} parent=11 // pred_region
          _
        $region28: #{tpu_custom_call.1} parent=11 // pred_fallthru
          _
        // Predicated region
        $region29: #{tpu_custom_call.1} parent=11 // pred_check
          %p221 = pneg %p147
        $region30: #{tpu_custom_call.1} parent=11 // pred_check_branch
          %223 = sbr.rel (%p221) target = $region32
        $region31: #{tpu_custom_call.1} parent=11 // pred_region
          _
        $region32: #{tpu_custom_call.1} parent=11 // pred_fallthru
          _
        // Predicated region
        $region33: #{tpu_custom_call.1} parent=11 // pred_check
          %p224 = pneg %p168
        $region34: #{tpu_custom_call.1} parent=11 // pred_check_branch
          %226 = sbr.rel (%p224) target = $region36
        $region35: #{tpu_custom_call.1} parent=11 // pred_region
          _
        $region36: #{tpu_custom_call.1} parent=11 // pred_fallthru
          _
      $region12: #{tpu_custom_call.1} parent=5 // pred_fallthru
        _
      %p227 = scmp.lt.s32.totalorder %s16, 2
      // Predicated region
      $region37: #{tpu_custom_call.1} parent=5 // pred_check
        %p228 = pneg %p227
      $region38: #{tpu_custom_call.1} parent=5 // pred_check_branch
        %230 = sbr.rel (%p228) target = $region40
      $region39: #{tpu_custom_call.1} parent=5 // pred_region
        // Predicated region
        $region41: #{tpu_custom_call.1} parent=39 // pred_check
          %p231 = pneg %p36
        $region42: #{tpu_custom_call.1} parent=39 // pred_check_branch
          %233 = sbr.rel (%p231) target = $region44
        $region43: #{tpu_custom_call.1} parent=39 // pred_region
          %p234 = scmp.lt.s32.totalorder %s16, 1
          %s235 = scalar_select %p234, %s16, 1
          %s236 = smul.addr %s235, 32
          %s237 = smul.addr %s236, 4
          %s238 = scalar_lea.vmem %s0, %s237
        $region44: #{tpu_custom_call.1} parent=39 // pred_fallthru
          _
      $region40: #{tpu_custom_call.1} parent=5 // pred_fallthru
        _
      %p239 = scmp.le.s32.totalorder 1, %s16
      %p240 = scmp.lt.s32.totalorder %s16, 3
      %p241 = pnand %p239, %p240
      %p242 = pneg %p241
      // Predicated region
      $region45: #{tpu_custom_call.1} parent=5 // pred_check
        _
      $region46: #{tpu_custom_call.1} parent=5 // pred_check_branch
        %244 = sbr.rel (%p241) target = $region48
      $region47: #{tpu_custom_call.1} parent=5 // pred_region
        %s245 = ssub.s32 %s16, 1
        %p246 = scmp.lt.s32.totalorder %s21, 1
        %s247 = scalar_select %p246, %s21, 1
        %s248 = smul.addr %s247, 32
        %s249 = smul.addr %s248, 4
        %s250 = scalar_lea.vmem %s0, %s249
        %p251 = pneg %p42
        %p252 = pneg %p39
        %p253 = pneg %p63
        %p254 = pneg %p60
        %p255 = pneg %p84
        %p256 = pneg %p81
        %p257 = pneg %p105
        %p258 = pneg %p102
        %p259 = pneg %p126
        %p260 = pneg %p123
        %p261 = pneg %p147
        %p262 = pneg %p144
        %p263 = pneg %p168
        %p264 = pneg %p165
        %p265 = pneg %p194
        %p266 = pneg %p191
        %s267 = sand.u32 %s181, 1
        %s268 = scalar_lea.sflag [#allocation4], %s267
        %s269 = sand.u32 %s181, 1
        %s270 = smul.addr %s269, 512
        %s271 = scalar_lea.vmem [#allocation3], %s270
        %p272 = scmp.lt.s32.totalorder %s21, 1
        %s273 = scalar_select %p272, %s21, 1
        %s274 = smul.addr %s273, 32
        %s275 = smul.addr %s274, 4
        %s276 = scalar_lea.vmem %s0, %s275
        %v278 = vld [vmem:[%s276] sm:$0xf]
        %v279 = vld [vmem:[%s276 + $0x4] sm:$0xf]
        %v280 = vld [vmem:[%s276 + $0x8] sm:$0xf]
        %v281 = vld [vmem:[%s276 + $0xc] sm:$0xf]
        %v282 = vld [vmem:[%s276 + $0x10] sm:$0xf]
        %v283 = vld [vmem:[%s276 + $0x14] sm:$0xf]
        %v284 = vld [vmem:[%s276 + $0x18] sm:$0xf]
        %v285 = vld [vmem:[%s276 + $0x1c] sm:$0xf]
        %v286 = vld [vmem:[%s276 + $0x20] sm:$0xf]
        %v287 = vld [vmem:[%s276 + $0x24] sm:$0xf]
        %v288 = vld [vmem:[%s276 + $0x28] sm:$0xf]
        %v289 = vld [vmem:[%s276 + $0x2c] sm:$0xf]
        %v290 = vld [vmem:[%s276 + $0x30] sm:$0xf]
        %v291 = vld [vmem:[%s276 + $0x34] sm:$0xf]
        %v292 = vld [vmem:[%s276 + $0x38] sm:$0xf]
        %v293 = vld [vmem:[%s276 + $0x3c] sm:$0xf]
        %v294 = vld [vmem:[%s276 + $0x40] sm:$0xf]
        %v295 = vld [vmem:[%s276 + $0x44] sm:$0xf]
        %v296 = vld [vmem:[%s276 + $0x48] sm:$0xf]
        %v297 = vld [vmem:[%s276 + $0x4c] sm:$0xf]
        %v298 = vld [vmem:[%s276 + $0x50] sm:$0xf]
        %v299 = vld [vmem:[%s276 + $0x54] sm:$0xf]
        %v300 = vld [vmem:[%s276 + $0x58] sm:$0xf]
        %v301 = vld [vmem:[%s276 + $0x5c] sm:$0xf]
        %v302 = vld [vmem:[%s276 + $0x60] sm:$0xf]
        %v303 = vld [vmem:[%s276 + $0x64] sm:$0xf]
        %v304 = vld [vmem:[%s276 + $0x68] sm:$0xf]
        %v305 = vld [vmem:[%s276 + $0x6c] sm:$0xf]
        %v306 = vld [vmem:[%s276 + $0x70] sm:$0xf]
        %v307 = vld [vmem:[%s276 + $0x74] sm:$0xf]
        %v308 = vld [vmem:[%s276 + $0x78] sm:$0xf]
        %v309 = vld [vmem:[%s276 + $0x7c] sm:$0xf]
        %v310 = vld [vmem:[%s1] sm:$0xf]
        %v311 = vld [vmem:[%s1 + $0x4] sm:$0xf]
        %v312 = vld [vmem:[%s1 + $0x8] sm:$0xf]
        %v313 = vld [vmem:[%s1 + $0xc] sm:$0xf]
        %v314 = vld [vmem:[%s2] sm:$0x1]
        %v316 = vperm.slane %v314, 0
        %v350 = vunpack.c.l.b16 %v278
        %v351 = vunpack.c.l.b16 %v279
        %v352 = vunpack.c.l.b16 %v280
        %v353 = vunpack.c.l.b16 %v281
        %v354 = vunpack.c.l.b16 %v282
        %v355 = vunpack.c.l.b16 %v283
        %v356 = vunpack.c.l.b16 %v284
        %v357 = vunpack.c.l.b16 %v285
        %v358 = vunpack.c.l.b16 %v286
        %v359 = vunpack.c.l.b16 %v287
        %v360 = vunpack.c.l.b16 %v288
        %v361 = vunpack.c.l.b16 %v289
        %v362 = vunpack.c.l.b16 %v290
        %v363 = vunpack.c.l.b16 %v291
        %v364 = vunpack.c.l.b16 %v292
        %v365 = vunpack.c.l.b16 %v293
        %v366 = vunpack.c.l.b16 %v294
        %v367 = vunpack.c.l.b16 %v295
        %v368 = vunpack.c.l.b16 %v296
        %v369 = vunpack.c.l.b16 %v297
        %v370 = vunpack.c.l.b16 %v298
        %v371 = vunpack.c.l.b16 %v299
        %v372 = vunpack.c.l.b16 %v300
        %v373 = vunpack.c.l.b16 %v301
        %v374 = vunpack.c.l.b16 %v302
        %v375 = vunpack.c.l.b16 %v303
        %v376 = vunpack.c.l.b16 %v304
        %v377 = vunpack.c.l.b16 %v305
        %v378 = vunpack.c.l.b16 %v306
        %v379 = vunpack.c.l.b16 %v307
        %v380 = vunpack.c.l.b16 %v308
        %v381 = vunpack.c.l.b16 %v309
        %v382 = vpack.c.b16 %v351, %v350
        %v383 = vpack.c.b16 %v353, %v352
        %v384 = vpack.c.b16 %v355, %v354
        %v385 = vpack.c.b16 %v357, %v356
        %v386 = vpack.c.b16 %v359, %v358
        %v387 = vpack.c.b16 %v361, %v360
        %v388 = vpack.c.b16 %v363, %v362
        %v389 = vpack.c.b16 %v365, %v364
        %v390 = vpack.c.b16 %v367, %v366
        %v391 = vpack.c.b16 %v369, %v368
        %v392 = vpack.c.b16 %v371, %v370
        %v393 = vpack.c.b16 %v373, %v372
        %v394 = vpack.c.b16 %v375, %v374
        %v395 = vpack.c.b16 %v377, %v376
        %v396 = vpack.c.b16 %v379, %v378
        %v397 = vpack.c.b16 %v381, %v380
        %v402 = vunpack.c.l.b16 %v310
        %v403 = vunpack.c.l.b16 %v311
        %v404 = vunpack.c.l.b16 %v312
        %v405 = vunpack.c.l.b16 %v313
        %v406 = vpack.c.b16 %v403, %v402
        %v407 = vpack.c.b16 %v405, %v404
        %vm410 = vcmask 261120
        %v412 = vsel %vm410, %v382, 0
        %v415 = vsel %vm410, %v383, 0
        %v418 = vsel %vm410, %v384, 0
        %v421 = vsel %vm410, %v385, 0
        %v424 = vsel %vm410, %v386, 0
        %v427 = vsel %vm410, %v387, 0
        %v430 = vsel %vm410, %v388, 0
        %v433 = vsel %vm410, %v389, 0
        %v436 = vsel %vm410, %v390, 0
        %v439 = vsel %vm410, %v391, 0
        %v442 = vsel %vm410, %v392, 0
        %v445 = vsel %vm410, %v393, 0
        %v448 = vsel %vm410, %v394, 0
        %v451 = vsel %vm410, %v395, 0
        %v454 = vsel %vm410, %v396, 0
        %v457 = vsel %vm410, %v397, 0
        %459 = vmatpush.bf16.msra.mxu0 0
        %460 = vmatpush.bf16.msra.mxu0 0
        %461 = vmatpush.bf16.msra.mxu0 0
        %462 = vmatpush.bf16.msra.mxu0 0
        %463 = vmatpush.bf16.msra.mxu0 0
        %464 = vmatpush.bf16.msra.mxu0 0
        %465 = vmatpush.bf16.msra.mxu0 %v407
        %466 = vmatpush.bf16.msra.mxu0 %v406
        %467 = vmatmul.bf16.gmra.mxu0 %v412
        %v468 = vpop.f32.mrf.mxu0
        %v469 = vadd.f32 %v316, %v468
        %v470 = vpop.f32.mrf.mxu0
        %v471 = vadd.f32 %v316, %v470
        %472 = vmatmul.bf16.gmra.mxu0 %v415
        %v473 = vpop.f32.mrf.mxu0
        %v474 = vadd.f32 %v316, %v473
        %v475 = vpop.f32.mrf.mxu0
        %v476 = vadd.f32 %v316, %v475
        %477 = vmatmul.bf16.gmra.mxu0 %v418
        %v478 = vpop.f32.mrf.mxu0
        %v479 = vadd.f32 %v316, %v478
        %v480 = vpop.f32.mrf.mxu0
        %v481 = vadd.f32 %v316, %v480
        %482 = vmatmul.bf16.gmra.mxu0 %v421
        %v483 = vpop.f32.mrf.mxu0
        %v484 = vadd.f32 %v316, %v483
        %v485 = vpop.f32.mrf.mxu0
        %v486 = vadd.f32 %v316, %v485
        %487 = vmatmul.bf16.gmra.mxu0 %v424
        %v488 = vpop.f32.mrf.mxu0
        %v489 = vadd.f32 %v316, %v488
        %v490 = vpop.f32.mrf.mxu0
        %v491 = vadd.f32 %v316, %v490
        %492 = vmatmul.bf16.gmra.mxu0 %v427
        %v493 = vpop.f32.mrf.mxu0
        %v494 = vadd.f32 %v316, %v493
        %v495 = vpop.f32.mrf.mxu0
        %v496 = vadd.f32 %v316, %v495
        %497 = vmatmul.bf16.gmra.mxu0 %v430
        %v498 = vpop.f32.mrf.mxu0
        %v499 = vadd.f32 %v316, %v498
        %v500 = vpop.f32.mrf.mxu0
        %v501 = vadd.f32 %v316, %v500
        %502 = vmatmul.bf16.gmra.mxu0 %v433
        %v503 = vpop.f32.mrf.mxu0
        %v504 = vadd.f32 %v316, %v503
        %v505 = vpop.f32.mrf.mxu0
        %v506 = vadd.f32 %v316, %v505
        %507 = vmatmul.bf16.gmra.mxu0 %v436
        %v508 = vpop.f32.mrf.mxu0
        %v509 = vadd.f32 %v316, %v508
        %v510 = vpop.f32.mrf.mxu0
        %v511 = vadd.f32 %v316, %v510
        %512 = vmatmul.bf16.gmra.mxu0 %v439
        %v513 = vpop.f32.mrf.mxu0
        %v514 = vadd.f32 %v316, %v513
        %v515 = vpop.f32.mrf.mxu0
        %v516 = vadd.f32 %v316, %v515
        %517 = vmatmul.bf16.gmra.mxu0 %v442
        %v518 = vpop.f32.mrf.mxu0
        %v519 = vadd.f32 %v316, %v518
        %v520 = vpop.f32.mrf.mxu0
        %v521 = vadd.f32 %v316, %v520
        %522 = vmatmul.bf16.gmra.mxu0 %v445
        %v523 = vpop.f32.mrf.mxu0
        %v524 = vadd.f32 %v316, %v523
        %v525 = vpop.f32.mrf.mxu0
        %v526 = vadd.f32 %v316, %v525
        %527 = vmatmul.bf16.gmra.mxu0 %v448
        %v528 = vpop.f32.mrf.mxu0
        %v529 = vadd.f32 %v316, %v528
        %v530 = vpop.f32.mrf.mxu0
        %v531 = vadd.f32 %v316, %v530
        %532 = vmatmul.bf16.gmra.mxu0 %v451
        %v533 = vpop.f32.mrf.mxu0
        %v534 = vadd.f32 %v316, %v533
        %v535 = vpop.f32.mrf.mxu0
        %v536 = vadd.f32 %v316, %v535
        %537 = vmatmul.bf16.gmra.mxu0 %v454
        %v538 = vpop.f32.mrf.mxu0
        %v539 = vadd.f32 %v316, %v538
        %v540 = vpop.f32.mrf.mxu0
        %v541 = vadd.f32 %v316, %v540
        %542 = vmatmul.bf16.gmra.mxu0 %v457
        %v543 = vpop.f32.mrf.mxu0
        %v544 = vadd.f32 %v316, %v543
        %v545 = vpop.f32.mrf.mxu0
        %v546 = vadd.f32 %v316, %v545
        %547 = vdwg.mxu0
        %v548 = vmax.f32 %v469, 0.0
        %v549 = vmax.f32 %v471, 0.0
        %v550 = vmax.f32 %v474, 0.0
        %v551 = vmax.f32 %v476, 0.0
        %v552 = vmax.f32 %v479, 0.0
        %v553 = vmax.f32 %v481, 0.0
        %v554 = vmax.f32 %v484, 0.0
        %v555 = vmax.f32 %v486, 0.0
        %v556 = vmax.f32 %v489, 0.0
        %v557 = vmax.f32 %v491, 0.0
        %v558 = vmax.f32 %v494, 0.0
        %v559 = vmax.f32 %v496, 0.0
        %v560 = vmax.f32 %v499, 0.0
        %v561 = vmax.f32 %v501, 0.0
        %v562 = vmax.f32 %v504, 0.0
        %v563 = vmax.f32 %v506, 0.0
        %v564 = vmax.f32 %v509, 0.0
        %v565 = vmax.f32 %v511, 0.0
        %v566 = vmax.f32 %v514, 0.0
        %v567 = vmax.f32 %v516, 0.0
        %v568 = vmax.f32 %v519, 0.0
        %v569 = vmax.f32 %v521, 0.0
        %v570 = vmax.f32 %v524, 0.0
        %v571 = vmax.f32 %v526, 0.0
        %v572 = vmax.f32 %v529, 0.0
        %v573 = vmax.f32 %v531, 0.0
        %v574 = vmax.f32 %v534, 0.0
        %v575 = vmax.f32 %v536, 0.0
        %v576 = vmax.f32 %v539, 0.0
        %v577 = vmax.f32 %v541, 0.0
        %v578 = vmax.f32 %v544, 0.0
        %v579 = vmax.f32 %v546, 0.0
        %v580 = vpack.c.bf16 %v548, %v548
        %v581 = vpack.c.bf16 %v549, %v549
        %v582 = vpack.c.bf16 %v550, %v550
        %v583 = vpack.c.bf16 %v551, %v551
        %v584 = vpack.c.bf16 %v552, %v552
        %v585 = vpack.c.bf16 %v553, %v553
        %v586 = vpack.c.bf16 %v554, %v554
        %v587 = vpack.c.bf16 %v555, %v555
        %v588 = vpack.c.bf16 %v556, %v556
        %v589 = vpack.c.bf16 %v557, %v557
        %v590 = vpack.c.bf16 %v558, %v558
        %v591 = vpack.c.bf16 %v559, %v559
        %v592 = vpack.c.bf16 %v560, %v560
        %v593 = vpack.c.bf16 %v561, %v561
        %v594 = vpack.c.bf16 %v562, %v562
        %v595 = vpack.c.bf16 %v563, %v563
        %v596 = vpack.c.bf16 %v564, %v564
        %v597 = vpack.c.bf16 %v565, %v565
        %v598 = vpack.c.bf16 %v566, %v566
        %v599 = vpack.c.bf16 %v567, %v567
        %v600 = vpack.c.bf16 %v568, %v568
        %v601 = vpack.c.bf16 %v569, %v569
        %v602 = vpack.c.bf16 %v570, %v570
        %v603 = vpack.c.bf16 %v571, %v571
        %v604 = vpack.c.bf16 %v572, %v572
        %v605 = vpack.c.bf16 %v573, %v573
        %v606 = vpack.c.bf16 %v574, %v574
        %v607 = vpack.c.bf16 %v575, %v575
        %v608 = vpack.c.bf16 %v576, %v576
        %v609 = vpack.c.bf16 %v577, %v577
        %v610 = vpack.c.bf16 %v578, %v578
        %v611 = vpack.c.bf16 %v579, %v579
        %vm612 = vcmask 60416
        %613 = vst.msk [vmem:[#allocation2] sm:$0xf] %vm612, %v580
        %614 = vst.msk [vmem:[#allocation2 + $0x4] sm:$0xf] %vm612, %v581
        %615 = vst.msk [vmem:[#allocation2 + $0x8] sm:$0xf] %vm612, %v582
        %616 = vst.msk [vmem:[#allocation2 + $0xc] sm:$0xf] %vm612, %v583
        %617 = vst.msk [vmem:[#allocation2 + $0x10] sm:$0xf] %vm612, %v584
        %618 = vst.msk [vmem:[#allocation2 + $0x14] sm:$0xf] %vm612, %v585
        %619 = vst.msk [vmem:[#allocation2 + $0x18] sm:$0xf] %vm612, %v586
        %620 = vst.msk [vmem:[#allocation2 + $0x1c] sm:$0xf] %vm612, %v587
        %621 = vst.msk [vmem:[#allocation2 + $0x20] sm:$0xf] %vm612, %v588
        %622 = vst.msk [vmem:[#allocation2 + $0x24] sm:$0xf] %vm612, %v589
        %623 = vst.msk [vmem:[#allocation2 + $0x28] sm:$0xf] %vm612, %v590
        %624 = vst.msk [vmem:[#allocation2 + $0x2c] sm:$0xf] %vm612, %v591
        %625 = vst.msk [vmem:[#allocation2 + $0x30] sm:$0xf] %vm612, %v592
        %626 = vst.msk [vmem:[#allocation2 + $0x34] sm:$0xf] %vm612, %v593
        %627 = vst.msk [vmem:[#allocation2 + $0x38] sm:$0xf] %vm612, %v594
        %628 = vst.msk [vmem:[#allocation2 + $0x3c] sm:$0xf] %vm612, %v595
        %629 = vst.msk [vmem:[#allocation2 + $0x40] sm:$0xf] %vm612, %v596
        %630 = vst.msk [vmem:[#allocation2 + $0x44] sm:$0xf] %vm612, %v597
        %631 = vst.msk [vmem:[#allocation2 + $0x48] sm:$0xf] %vm612, %v598
        %632 = vst.msk [vmem:[#allocation2 + $0x4c] sm:$0xf] %vm612, %v599
        %633 = vst.msk [vmem:[#allocation2 + $0x50] sm:$0xf] %vm612, %v600
        %634 = vst.msk [vmem:[#allocation2 + $0x54] sm:$0xf] %vm612, %v601
        %635 = vst.msk [vmem:[#allocation2 + $0x58] sm:$0xf] %vm612, %v602
        %636 = vst.msk [vmem:[#allocation2 + $0x5c] sm:$0xf] %vm612, %v603
        %637 = vst.msk [vmem:[#allocation2 + $0x60] sm:$0xf] %vm612, %v604
        %638 = vst.msk [vmem:[#allocation2 + $0x64] sm:$0xf] %vm612, %v605
        %639 = vst.msk [vmem:[#allocation2 + $0x68] sm:$0xf] %vm612, %v606
        %640 = vst.msk [vmem:[#allocation2 + $0x6c] sm:$0xf] %vm612, %v607
        %641 = vst.msk [vmem:[#allocation2 + $0x70] sm:$0xf] %vm612, %v608
        %642 = vst.msk [vmem:[#allocation2 + $0x74] sm:$0xf] %vm612, %v609
        %643 = vst.msk [vmem:[#allocation2 + $0x78] sm:$0xf] %vm612, %v610
        %644 = vst.msk [vmem:[#allocation2 + $0x7c] sm:$0xf] %vm612, %v611
        %vm645 = vsmask.f32 3328
        %vm646 = vsmask.f32 7440
        %vm647 = vmor %vm645, %vm646
        %v649 = vshrl.u32 %v580, 16
        %v651 = vrot.slane %v649, 4
        %v652 = vshll.u32 %v580, 16
        %v654 = vrot.slane %v652, 5
        %v655 = vor.u32 %v651, %v654
        %v656 = vrot.slane %v655, 4
        %v658 = vshll.u32 %v581, 16
        %v660 = vrot.slane %v658, 5
        %v661 = vsel %vm647, %v656, %v660
        %v662 = vshrl.u32 %v581, 16
        %v664 = vrot.slane %v662, 4
        %v665 = vor.u32 %v664, %v660
        %v666 = vrot.slane %v665, 4
        %v668 = vshrl.u32 %v582, 16
        %v670 = vrot.slane %v668, 4
        %v671 = vshll.u32 %v582, 16
        %v673 = vrot.slane %v671, 5
        %v674 = vor.u32 %v670, %v673
        %v675 = vrot.slane %v674, 4
        %v677 = vshll.u32 %v583, 16
        %v679 = vrot.slane %v677, 5
        %v680 = vsel %vm647, %v675, %v679
        %v681 = vshrl.u32 %v583, 16
        %v683 = vrot.slane %v681, 4
        %v684 = vor.u32 %v683, %v679
        %v685 = vrot.slane %v684, 4
        %v687 = vshrl.u32 %v584, 16
        %v689 = vrot.slane %v687, 4
        %v690 = vshll.u32 %v584, 16
        %v692 = vrot.slane %v690, 5
        %v693 = vor.u32 %v689, %v692
        %v694 = vrot.slane %v693, 4
        %v696 = vshll.u32 %v585, 16
        %v698 = vrot.slane %v696, 5
        %v699 = vsel %vm647, %v694, %v698
        %v700 = vshrl.u32 %v585, 16
        %v702 = vrot.slane %v700, 4
        %v703 = vor.u32 %v702, %v698
        %v704 = vrot.slane %v703, 4
        %v706 = vshrl.u32 %v586, 16
        %v708 = vrot.slane %v706, 4
        %v709 = vshll.u32 %v586, 16
        %v711 = vrot.slane %v709, 5
        %v712 = vor.u32 %v708, %v711
        %v713 = vrot.slane %v712, 4
        %v715 = vshll.u32 %v587, 16
        %v717 = vrot.slane %v715, 5
        %v718 = vsel %vm647, %v713, %v717
        %v719 = vshrl.u32 %v587, 16
        %v721 = vrot.slane %v719, 4
        %v722 = vor.u32 %v721, %v717
        %v723 = vrot.slane %v722, 4
        %v725 = vshrl.u32 %v588, 16
        %v727 = vrot.slane %v725, 4
        %v728 = vshll.u32 %v588, 16
        %v730 = vrot.slane %v728, 5
        %v731 = vor.u32 %v727, %v730
        %v732 = vrot.slane %v731, 4
        %v734 = vshll.u32 %v589, 16
        %v736 = vrot.slane %v734, 5
        %v737 = vsel %vm647, %v732, %v736
        %v738 = vshrl.u32 %v589, 16
        %v740 = vrot.slane %v738, 4
        %v741 = vor.u32 %v740, %v736
        %v742 = vrot.slane %v741, 4
        %v744 = vshrl.u32 %v590, 16
        %v746 = vrot.slane %v744, 4
        %v747 = vshll.u32 %v590, 16
        %v749 = vrot.slane %v747, 5
        %v750 = vor.u32 %v746, %v749
        %v751 = vrot.slane %v750, 4
        %v753 = vshll.u32 %v591, 16
        %v755 = vrot.slane %v753, 5
        %v756 = vsel %vm647, %v751, %v755
        %v757 = vshrl.u32 %v591, 16
        %v759 = vrot.slane %v757, 4
        %v760 = vor.u32 %v759, %v755
        %v761 = vrot.slane %v760, 4
        %v763 = vshrl.u32 %v592, 16
        %v765 = vrot.slane %v763, 4
        %v766 = vshll.u32 %v592, 16
        %v768 = vrot.slane %v766, 5
        %v769 = vor.u32 %v765, %v768
        %v770 = vrot.slane %v769, 4
        %v772 = vshll.u32 %v593, 16
        %v774 = vrot.slane %v772, 5
        %v775 = vsel %vm647, %v770, %v774
        %v776 = vshrl.u32 %v593, 16
        %v778 = vrot.slane %v776, 4
        %v779 = vor.u32 %v778, %v774
        %v780 = vrot.slane %v779, 4
        %v782 = vshrl.u32 %v594, 16
        %v784 = vrot.slane %v782, 4
        %v785 = vshll.u32 %v594, 16
        %v787 = vrot.slane %v785, 5
        %v788 = vor.u32 %v784, %v787
        %v789 = vrot.slane %v788, 4
        %v791 = vshll.u32 %v595, 16
        %v793 = vrot.slane %v791, 5
        %v794 = vsel %vm647, %v789, %v793
        %v795 = vshrl.u32 %v595, 16
        %v797 = vrot.slane %v795, 4
        %v798 = vor.u32 %v797, %v793
        %v799 = vrot.slane %v798, 4
        %v801 = vshrl.u32 %v596, 16
        %v803 = vrot.slane %v801, 4
        %v804 = vshll.u32 %v596, 16
        %v806 = vrot.slane %v804, 5
        %v807 = vor.u32 %v803, %v806
        %v808 = vrot.slane %v807, 4
        %v810 = vshll.u32 %v597, 16
        %v812 = vrot.slane %v810, 5
        %v813 = vsel %vm647, %v808, %v812
        %v814 = vshrl.u32 %v597, 16
        %v816 = vrot.slane %v814, 4
        %v817 = vor.u32 %v816, %v812
        %v818 = vrot.slane %v817, 4
        %v820 = vshrl.u32 %v598, 16
        %v822 = vrot.slane %v820, 4
        %v823 = vshll.u32 %v598, 16
        %v825 = vrot.slane %v823, 5
        %v826 = vor.u32 %v822, %v825
        %v827 = vrot.slane %v826, 4
        %v829 = vshll.u32 %v599, 16
        %v831 = vrot.slane %v829, 5
        %v832 = vsel %vm647, %v827, %v831
        %v833 = vshrl.u32 %v599, 16
        %v835 = vrot.slane %v833, 4
        %v836 = vor.u32 %v835, %v831
        %v837 = vrot.slane %v836, 4
        %v839 = vshrl.u32 %v600, 16
        %v841 = vrot.slane %v839, 4
        %v842 = vshll.u32 %v600, 16
        %v844 = vrot.slane %v842, 5
        %v845 = vor.u32 %v841, %v844
        %v846 = vrot.slane %v845, 4
        %v848 = vshll.u32 %v601, 16
        %v850 = vrot.slane %v848, 5
        %v851 = vsel %vm647, %v846, %v850
        %v852 = vshrl.u32 %v601, 16
        %v854 = vrot.slane %v852, 4
        %v855 = vor.u32 %v854, %v850
        %v856 = vrot.slane %v855, 4
        %v858 = vshrl.u32 %v602, 16
        %v860 = vrot.slane %v858, 4
        %v861 = vshll.u32 %v602, 16
        %v863 = vrot.slane %v861, 5
        %v864 = vor.u32 %v860, %v863
        %v865 = vrot.slane %v864, 4
        %v867 = vshll.u32 %v603, 16
        %v869 = vrot.slane %v867, 5
        %v870 = vsel %vm647, %v865, %v869
        %v871 = vshrl.u32 %v603, 16
        %v873 = vrot.slane %v871, 4
        %v874 = vor.u32 %v873, %v869
        %v875 = vrot.slane %v874, 4
        %v877 = vshrl.u32 %v604, 16
        %v879 = vrot.slane %v877, 4
        %v880 = vshll.u32 %v604, 16
        %v882 = vrot.slane %v880, 5
        %v883 = vor.u32 %v879, %v882
        %v884 = vrot.slane %v883, 4
        %v886 = vshll.u32 %v605, 16
        %v888 = vrot.slane %v886, 5
        %v889 = vsel %vm647, %v884, %v888
        %v890 = vshrl.u32 %v605, 16
        %v892 = vrot.slane %v890, 4
        %v893 = vor.u32 %v892, %v888
        %v894 = vrot.slane %v893, 4
        %v896 = vshrl.u32 %v606, 16
        %v898 = vrot.slane %v896, 4
        %v899 = vshll.u32 %v606, 16
        %v901 = vrot.slane %v899, 5
        %v902 = vor.u32 %v898, %v901
        %v903 = vrot.slane %v902, 4
        %v905 = vshll.u32 %v607, 16
        %v907 = vrot.slane %v905, 5
        %v908 = vsel %vm647, %v903, %v907
        %v909 = vshrl.u32 %v607, 16
        %v911 = vrot.slane %v909, 4
        %v912 = vor.u32 %v911, %v907
        %v913 = vrot.slane %v912, 4
        %v915 = vshrl.u32 %v608, 16
        %v917 = vrot.slane %v915, 4
        %v918 = vshll.u32 %v608, 16
        %v920 = vrot.slane %v918, 5
        %v921 = vor.u32 %v917, %v920
        %v922 = vrot.slane %v921, 4
        %v924 = vshll.u32 %v609, 16
        %v926 = vrot.slane %v924, 5
        %v927 = vsel %vm647, %v922, %v926
        %v928 = vshrl.u32 %v609, 16
        %v930 = vrot.slane %v928, 4
        %v931 = vor.u32 %v930, %v926
        %v932 = vrot.slane %v931, 4
        %v934 = vshrl.u32 %v610, 16
        %v936 = vrot.slane %v934, 4
        %v937 = vshll.u32 %v610, 16
        %v939 = vrot.slane %v937, 5
        %v940 = vor.u32 %v936, %v939
        %v941 = vrot.slane %v940, 4
        %v943 = vshll.u32 %v611, 16
        %v945 = vrot.slane %v943, 5
        %v946 = vsel %vm647, %v941, %v945
        %v947 = vshrl.u32 %v611, 16
        %v949 = vrot.slane %v947, 4
        %v950 = vor.u32 %v949, %v945
        %v951 = vrot.slane %v950, 4
        %952 = vrot.lane.b32.xlu0 %v661, 8
        %v953 = vpop.permute.xlu0 %952
        %954 = vrot.lane.b32.xlu0 %v666, 8
        %v955 = vpop.permute.xlu0 %954
        %956 = vrot.lane.b32.xlu0 %v680, 8
        %v957 = vpop.permute.xlu0 %956
        %958 = vrot.lane.b32.xlu0 %v685, 8
        %v959 = vpop.permute.xlu0 %958
        %960 = vrot.lane.b32.xlu0 %v699, 8
        %v961 = vpop.permute.xlu0 %960
        %962 = vrot.lane.b32.xlu0 %v704, 8
        %v963 = vpop.permute.xlu0 %962
        %964 = vrot.lane.b32.xlu0 %v718, 8
        %v965 = vpop.permute.xlu0 %964
        %966 = vrot.lane.b32.xlu0 %v723, 8
        %v967 = vpop.permute.xlu0 %966
        %968 = vrot.lane.b32.xlu0 %v737, 8
        %v969 = vpop.permute.xlu0 %968
        %970 = vrot.lane.b32.xlu0 %v742, 8
        %v971 = vpop.permute.xlu0 %970
        %972 = vrot.lane.b32.xlu0 %v756, 8
        %v973 = vpop.permute.xlu0 %972
        %974 = vrot.lane.b32.xlu0 %v761, 8
        %v975 = vpop.permute.xlu0 %974
        %976 = vrot.lane.b32.xlu0 %v775, 8
        %v977 = vpop.permute.xlu0 %976
        %978 = vrot.lane.b32.xlu0 %v780, 8
        %v979 = vpop.permute.xlu0 %978
        %980 = vrot.lane.b32.xlu0 %v794, 8
        %v981 = vpop.permute.xlu0 %980
        %982 = vrot.lane.b32.xlu0 %v799, 8
        %v983 = vpop.permute.xlu0 %982
        %984 = vrot.lane.b32.xlu0 %v813, 8
        %v985 = vpop.permute.xlu0 %984
        %986 = vrot.lane.b32.xlu0 %v818, 8
        %v987 = vpop.permute.xlu0 %986
        %988 = vrot.lane.b32.xlu0 %v832, 8
        %v989 = vpop.permute.xlu0 %988
        %990 = vrot.lane.b32.xlu0 %v837, 8
        %v991 = vpop.permute.xlu0 %990
        %992 = vrot.lane.b32.xlu0 %v851, 8
        %v993 = vpop.permute.xlu0 %992
        %994 = vrot.lane.b32.xlu0 %v856, 8
        %v995 = vpop.permute.xlu0 %994
        %996 = vrot.lane.b32.xlu0 %v870, 8
        %v997 = vpop.permute.xlu0 %996
        %998 = vrot.lane.b32.xlu0 %v875, 8
        %v999 = vpop.permute.xlu0 %998
        %1000 = vrot.lane.b32.xlu0 %v889, 8
        %v1001 = vpop.permute.xlu0 %1000
        %1002 = vrot.lane.b32.xlu0 %v894, 8
        %v1003 = vpop.permute.xlu0 %1002
        %1004 = vrot.lane.b32.xlu0 %v908, 8
        %v1005 = vpop.permute.xlu0 %1004
        %1006 = vrot.lane.b32.xlu0 %v913, 8
        %v1007 = vpop.permute.xlu0 %1006
        %1008 = vrot.lane.b32.xlu0 %v927, 8
        %v1009 = vpop.permute.xlu0 %1008
        %1010 = vrot.lane.b32.xlu0 %v932, 8
        %v1011 = vpop.permute.xlu0 %1010
        %1012 = vrot.lane.b32.xlu0 %v946, 8
        %v1013 = vpop.permute.xlu0 %1012
        %1014 = vrot.lane.b32.xlu0 %v951, 8
        %v1015 = vpop.permute.xlu0 %1014
        %vm1048 = vcmask 126016
        %1049 = vst.msk [vmem:[#allocation2] sm:$0xf] %vm1048, %v953
        %vm1050 = vcmask 126016
        %vm1051 = vmand %vm1050, %vm645
        %v1052 = vld [vmem:[#allocation2 + $0x4] sm:$0xf]
        %v1053 = vsel %vm1051, %v955, %v1052
        %1054 = vst [vmem:[#allocation2 + $0x4] sm:$0xf] %v1053
        %1055 = vst.msk [vmem:[#allocation2 + $0x8] sm:$0xf] %vm1048, %v957
        %v1056 = vld [vmem:[#allocation2 + $0xc] sm:$0xf]
        %v1057 = vsel %vm1051, %v959, %v1056
        %1058 = vst [vmem:[#allocation2 + $0xc] sm:$0xf] %v1057
        %1059 = vst.msk [vmem:[#allocation2 + $0x10] sm:$0xf] %vm1048, %v961
        %v1060 = vld [vmem:[#allocation2 + $0x14] sm:$0xf]
        %v1061 = vsel %vm1051, %v963, %v1060
        %1062 = vst [vmem:[#allocation2 + $0x14] sm:$0xf] %v1061
        %1063 = vst.msk [vmem:[#allocation2 + $0x18] sm:$0xf] %vm1048, %v965
        %v1064 = vld [vmem:[#allocation2 + $0x1c] sm:$0xf]
        %v1065 = vsel %vm1051, %v967, %v1064
        %1066 = vst [vmem:[#allocation2 + $0x1c] sm:$0xf] %v1065
        %1067 = vst.msk [vmem:[#allocation2 + $0x20] sm:$0xf] %vm1048, %v969
        %v1068 = vld [vmem:[#allocation2 + $0x24] sm:$0xf]
        %v1069 = vsel %vm1051, %v971, %v1068
        %1070 = vst [vmem:[#allocation2 + $0x24] sm:$0xf] %v1069
        %1071 = vst.msk [vmem:[#allocation2 + $0x28] sm:$0xf] %vm1048, %v973
        %v1072 = vld [vmem:[#allocation2 + $0x2c] sm:$0xf]
        %v1073 = vsel %vm1051, %v975, %v1072
        %1074 = vst [vmem:[#allocation2 + $0x2c] sm:$0xf] %v1073
        %1075 = vst.msk [vmem:[#allocation2 + $0x30] sm:$0xf] %vm1048, %v977
        %v1076 = vld [vmem:[#allocation2 + $0x34] sm:$0xf]
        %v1077 = vsel %vm1051, %v979, %v1076
        %1078 = vst [vmem:[#allocation2 + $0x34] sm:$0xf] %v1077
        %1079 = vst.msk [vmem:[#allocation2 + $0x38] sm:$0xf] %vm1048, %v981
        %v1080 = vld [vmem:[#allocation2 + $0x3c] sm:$0xf]
        %v1081 = vsel %vm1051, %v983, %v1080
        %1082 = vst [vmem:[#allocation2 + $0x3c] sm:$0xf] %v1081
        %1083 = vst.msk [vmem:[#allocation2 + $0x40] sm:$0xf] %vm1048, %v985
        %v1084 = vld [vmem:[#allocation2 + $0x44] sm:$0xf]
        %v1085 = vsel %vm1051, %v987, %v1084
        %1086 = vst [vmem:[#allocation2 + $0x44] sm:$0xf] %v1085
        %1087 = vst.msk [vmem:[#allocation2 + $0x48] sm:$0xf] %vm1048, %v989
        %v1088 = vld [vmem:[#allocation2 + $0x4c] sm:$0xf]
        %v1089 = vsel %vm1051, %v991, %v1088
        %1090 = vst [vmem:[#allocation2 + $0x4c] sm:$0xf] %v1089
        %1091 = vst.msk [vmem:[#allocation2 + $0x50] sm:$0xf] %vm1048, %v993
        %v1092 = vld [vmem:[#allocation2 + $0x54] sm:$0xf]
        %v1093 = vsel %vm1051, %v995, %v1092
        %1094 = vst [vmem:[#allocation2 + $0x54] sm:$0xf] %v1093
        %1095 = vst.msk [vmem:[#allocation2 + $0x58] sm:$0xf] %vm1048, %v997
        %v1096 = vld [vmem:[#allocation2 + $0x5c] sm:$0xf]
        %v1097 = vsel %vm1051, %v999, %v1096
        %1098 = vst [vmem:[#allocation2 + $0x5c] sm:$0xf] %v1097
        %1099 = vst.msk [vmem:[#allocation2 + $0x60] sm:$0xf] %vm1048, %v1001
        %v1100 = vld [vmem:[#allocation2 + $0x64] sm:$0xf]
        %v1101 = vsel %vm1051, %v1003, %v1100
        %1102 = vst [vmem:[#allocation2 + $0x64] sm:$0xf] %v1101
        %1103 = vst.msk [vmem:[#allocation2 + $0x68] sm:$0xf] %vm1048, %v1005
        %v1104 = vld [vmem:[#allocation2 + $0x6c] sm:$0xf]
        %v1105 = vsel %vm1051, %v1007, %v1104
        %1106 = vst [vmem:[#allocation2 + $0x6c] sm:$0xf] %v1105
        %1107 = vst.msk [vmem:[#allocation2 + $0x70] sm:$0xf] %vm1048, %v1009
        %v1108 = vld [vmem:[#allocation2 + $0x74] sm:$0xf]
        %v1109 = vsel %vm1051, %v1011, %v1108
        %1110 = vst [vmem:[#allocation2 + $0x74] sm:$0xf] %v1109
        %1111 = vst.msk [vmem:[#allocation2 + $0x78] sm:$0xf] %vm1048, %v1013
        %v1112 = vld [vmem:[#allocation2 + $0x7c] sm:$0xf]
        %v1113 = vsel %vm1051, %v1015, %v1112
        %1114 = vst [vmem:[#allocation2 + $0x7c] sm:$0xf] %v1113
        %vm1115 = vcmask 126019
        %vm1116 = vsmask.f32 7950
        %vm1117 = vmand %vm1115, %vm1116
        %v1118 = vld [vmem:[#allocation2 + $0x4] sm:$0x8]
        %v1119 = vsel %vm1117, 0, %v1118
        %1120 = vst [vmem:[#allocation2 + $0x4] sm:$0x8] %v1119
        %v1121 = vld [vmem:[#allocation2 + $0xc] sm:$0x8]
        %v1122 = vsel %vm1117, 0, %v1121
        %1123 = vst [vmem:[#allocation2 + $0xc] sm:$0x8] %v1122
        %v1124 = vld [vmem:[#allocation2 + $0x14] sm:$0x8]
        %v1125 = vsel %vm1117, 0, %v1124
        %1126 = vst [vmem:[#allocation2 + $0x14] sm:$0x8] %v1125
        %v1127 = vld [vmem:[#allocation2 + $0x1c] sm:$0x8]
        %v1128 = vsel %vm1117, 0, %v1127
        %1129 = vst [vmem:[#allocation2 + $0x1c] sm:$0x8] %v1128
        %v1130 = vld [vmem:[#allocation2 + $0x24] sm:$0x8]
        %v1131 = vsel %vm1117, 0, %v1130
        %1132 = vst [vmem:[#allocation2 + $0x24] sm:$0x8] %v1131
        %v1133 = vld [vmem:[#allocation2 + $0x2c] sm:$0x8]
        %v1134 = vsel %vm1117, 0, %v1133
        %1135 = vst [vmem:[#allocation2 + $0x2c] sm:$0x8] %v1134
        %v1136 = vld [vmem:[#allocation2 + $0x34] sm:$0x8]
        %v1137 = vsel %vm1117, 0, %v1136
        %1138 = vst [vmem:[#allocation2 + $0x34] sm:$0x8] %v1137
        %v1139 = vld [vmem:[#allocation2 + $0x3c] sm:$0x8]
        %v1140 = vsel %vm1117, 0, %v1139
        %1141 = vst [vmem:[#allocation2 + $0x3c] sm:$0x8] %v1140
        %v1142 = vld [vmem:[#allocation2 + $0x44] sm:$0x8]
        %v1143 = vsel %vm1117, 0, %v1142
        %1144 = vst [vmem:[#allocation2 + $0x44] sm:$0x8] %v1143
        %v1145 = vld [vmem:[#allocation2 + $0x4c] sm:$0x8]
        %v1146 = vsel %vm1117, 0, %v1145
        %1147 = vst [vmem:[#allocation2 + $0x4c] sm:$0x8] %v1146
        %v1148 = vld [vmem:[#allocation2 + $0x54] sm:$0x8]
        %v1149 = vsel %vm1117, 0, %v1148
        %1150 = vst [vmem:[#allocation2 + $0x54] sm:$0x8] %v1149
        %v1151 = vld [vmem:[#allocation2 + $0x5c] sm:$0x8]
        %v1152 = vsel %vm1117, 0, %v1151
        %1153 = vst [vmem:[#allocation2 + $0x5c] sm:$0x8] %v1152
        %v1154 = vld [vmem:[#allocation2 + $0x64] sm:$0x8]
        %v1155 = vsel %vm1117, 0, %v1154
        %1156 = vst [vmem:[#allocation2 + $0x64] sm:$0x8] %v1155
        %v1157 = vld [vmem:[#allocation2 + $0x6c] sm:$0x8]
        %v1158 = vsel %vm1117, 0, %v1157
        %1159 = vst [vmem:[#allocation2 + $0x6c] sm:$0x8] %v1158
        %v1160 = vld [vmem:[#allocation2 + $0x74] sm:$0x8]
        %v1161 = vsel %vm1117, 0, %v1160
        %1162 = vst [vmem:[#allocation2 + $0x74] sm:$0x8] %v1161
        %v1163 = vld [vmem:[#allocation2 + $0x7c] sm:$0x8]
        %v1164 = vsel %vm1117, 0, %v1163
        %1165 = vst [vmem:[#allocation2 + $0x7c] sm:$0x8] %v1164
        %1196 = vrot.lane.b32.xlu0 %v582, 16
        %v1197 = vpop.permute.xlu0 %1196
        %1198 = vrot.lane.b32.xlu0 %v583, 16
        %v1199 = vpop.permute.xlu0 %1198
        %1200 = vrot.lane.b32.xlu0 %v584, 16
        %v1201 = vpop.permute.xlu0 %1200
        %1202 = vrot.lane.b32.xlu0 %v585, 16
        %v1203 = vpop.permute.xlu0 %1202
        %1204 = vrot.lane.b32.xlu0 %v586, 16
        %v1205 = vpop.permute.xlu0 %1204
        %1206 = vrot.lane.b32.xlu0 %v587, 16
        %v1207 = vpop.permute.xlu0 %1206
        %1208 = vrot.lane.b32.xlu0 %v588, 16
        %v1209 = vpop.permute.xlu0 %1208
        %1210 = vrot.lane.b32.xlu0 %v589, 16
        %v1211 = vpop.permute.xlu0 %1210
        %1212 = vrot.lane.b32.xlu0 %v590, 16
        %v1213 = vpop.permute.xlu0 %1212
        %1214 = vrot.lane.b32.xlu0 %v591, 16
        %v1215 = vpop.permute.xlu0 %1214
        %1216 = vrot.lane.b32.xlu0 %v592, 16
        %v1217 = vpop.permute.xlu0 %1216
        %1218 = vrot.lane.b32.xlu0 %v593, 16
        %v1219 = vpop.permute.xlu0 %1218
        %1220 = vrot.lane.b32.xlu0 %v594, 16
        %v1221 = vpop.permute.xlu0 %1220
        %1222 = vrot.lane.b32.xlu0 %v595, 16
        %v1223 = vpop.permute.xlu0 %1222
        %1224 = vrot.lane.b32.xlu0 %v596, 16
        %v1225 = vpop.permute.xlu0 %1224
        %1226 = vrot.lane.b32.xlu0 %v597, 16
        %v1227 = vpop.permute.xlu0 %1226
        %1228 = vrot.lane.b32.xlu0 %v598, 16
        %v1229 = vpop.permute.xlu0 %1228
        %1230 = vrot.lane.b32.xlu0 %v599, 16
        %v1231 = vpop.permute.xlu0 %1230
        %1232 = vrot.lane.b32.xlu0 %v600, 16
        %v1233 = vpop.permute.xlu0 %1232
        %1234 = vrot.lane.b32.xlu0 %v601, 16
        %v1235 = vpop.permute.xlu0 %1234
        %1236 = vrot.lane.b32.xlu0 %v602, 16
        %v1237 = vpop.permute.xlu0 %1236
        %1238 = vrot.lane.b32.xlu0 %v603, 16
        %v1239 = vpop.permute.xlu0 %1238
        %1240 = vrot.lane.b32.xlu0 %v604, 16
        %v1241 = vpop.permute.xlu0 %1240
        %1242 = vrot.lane.b32.xlu0 %v605, 16
        %v1243 = vpop.permute.xlu0 %1242
        %1244 = vrot.lane.b32.xlu0 %v606, 16
        %v1245 = vpop.permute.xlu0 %1244
        %1246 = vrot.lane.b32.xlu0 %v607, 16
        %v1247 = vpop.permute.xlu0 %1246
        %1248 = vrot.lane.b32.xlu0 %v608, 16
        %v1249 = vpop.permute.xlu0 %1248
        %1250 = vrot.lane.b32.xlu0 %v609, 16
        %v1251 = vpop.permute.xlu0 %1250
        %1252 = vrot.lane.b32.xlu0 %v610, 16
        %v1253 = vpop.permute.xlu0 %1252
        %1254 = vrot.lane.b32.xlu0 %v611, 16
        %v1255 = vpop.permute.xlu0 %1254
        %vm1286 = vcmask 191616
        %1287 = vst.msk [vmem:[#allocation2] sm:$0xf] %vm1286, %v1197
        %1288 = vst.msk [vmem:[#allocation2 + $0x4] sm:$0xf] %vm1286, %v1199
        %1289 = vst.msk [vmem:[#allocation2 + $0x8] sm:$0xf] %vm1286, %v1201
        %1290 = vst.msk [vmem:[#allocation2 + $0xc] sm:$0xf] %vm1286, %v1203
        %1291 = vst.msk [vmem:[#allocation2 + $0x10] sm:$0xf] %vm1286, %v1205
        %1292 = vst.msk [vmem:[#allocation2 + $0x14] sm:$0xf] %vm1286, %v1207
        %1293 = vst.msk [vmem:[#allocation2 + $0x18] sm:$0xf] %vm1286, %v1209
        %1294 = vst.msk [vmem:[#allocation2 + $0x1c] sm:$0xf] %vm1286, %v1211
        %1295 = vst.msk [vmem:[#allocation2 + $0x20] sm:$0xf] %vm1286, %v1213
        %1296 = vst.msk [vmem:[#allocation2 + $0x24] sm:$0xf] %vm1286, %v1215
        %1297 = vst.msk [vmem:[#allocation2 + $0x28] sm:$0xf] %vm1286, %v1217
        %1298 = vst.msk [vmem:[#allocation2 + $0x2c] sm:$0xf] %vm1286, %v1219
        %1299 = vst.msk [vmem:[#allocation2 + $0x30] sm:$0xf] %vm1286, %v1221
        %1300 = vst.msk [vmem:[#allocation2 + $0x34] sm:$0xf] %vm1286, %v1223
        %1301 = vst.msk [vmem:[#allocation2 + $0x38] sm:$0xf] %vm1286, %v1225
        %1302 = vst.msk [vmem:[#allocation2 + $0x3c] sm:$0xf] %vm1286, %v1227
        %1303 = vst.msk [vmem:[#allocation2 + $0x40] sm:$0xf] %vm1286, %v1229
        %1304 = vst.msk [vmem:[#allocation2 + $0x44] sm:$0xf] %vm1286, %v1231
        %1305 = vst.msk [vmem:[#allocation2 + $0x48] sm:$0xf] %vm1286, %v1233
        %1306 = vst.msk [vmem:[#allocation2 + $0x4c] sm:$0xf] %vm1286, %v1235
        %1307 = vst.msk [vmem:[#allocation2 + $0x50] sm:$0xf] %vm1286, %v1237
        %1308 = vst.msk [vmem:[#allocation2 + $0x54] sm:$0xf] %vm1286, %v1239
        %1309 = vst.msk [vmem:[#allocation2 + $0x58] sm:$0xf] %vm1286, %v1241
        %1310 = vst.msk [vmem:[#allocation2 + $0x5c] sm:$0xf] %vm1286, %v1243
        %1311 = vst.msk [vmem:[#allocation2 + $0x60] sm:$0xf] %vm1286, %v1245
        %1312 = vst.msk [vmem:[#allocation2 + $0x64] sm:$0xf] %vm1286, %v1247
        %1313 = vst.msk [vmem:[#allocation2 + $0x68] sm:$0xf] %vm1286, %v1249
        %1314 = vst.msk [vmem:[#allocation2 + $0x6c] sm:$0xf] %vm1286, %v1251
        %1315 = vst.msk [vmem:[#allocation2 + $0x70] sm:$0xf] %vm1286, %v1253
        %1316 = vst.msk [vmem:[#allocation2 + $0x74] sm:$0xf] %vm1286, %v1255
        %s1317 = scalar_lea.vmem [#allocation2], 120
        %1318 = vst.msk [vmem:[%s1317] sm:$0xf] %vm1286, 0
        %1319 = vst.msk [vmem:[%s1317 + $0x4] sm:$0xf] %vm1286, 0
        %1320 = vrot.lane.b32.xlu0 %v680, 24
        %v1321 = vpop.permute.xlu0 %1320
        %1322 = vrot.lane.b32.xlu0 %v685, 24
        %v1323 = vpop.permute.xlu0 %1322
        %1324 = vrot.lane.b32.xlu0 %v699, 24
        %v1325 = vpop.permute.xlu0 %1324
        %1326 = vrot.lane.b32.xlu0 %v704, 24
        %v1327 = vpop.permute.xlu0 %1326
        %1328 = vrot.lane.b32.xlu0 %v718, 24
        %v1329 = vpop.permute.xlu0 %1328
        %1330 = vrot.lane.b32.xlu0 %v723, 24
        %v1331 = vpop.permute.xlu0 %1330
        %1332 = vrot.lane.b32.xlu0 %v737, 24
        %v1333 = vpop.permute.xlu0 %1332
        %1334 = vrot.lane.b32.xlu0 %v742, 24
        %v1335 = vpop.permute.xlu0 %1334
        %1336 = vrot.lane.b32.xlu0 %v756, 24
        %v1337 = vpop.permute.xlu0 %1336
        %1338 = vrot.lane.b32.xlu0 %v761, 24
        %v1339 = vpop.permute.xlu0 %1338
        %1340 = vrot.lane.b32.xlu0 %v775, 24
        %v1341 = vpop.permute.xlu0 %1340
        %1342 = vrot.lane.b32.xlu0 %v780, 24
        %v1343 = vpop.permute.xlu0 %1342
        %1344 = vrot.lane.b32.xlu0 %v794, 24
        %v1345 = vpop.permute.xlu0 %1344
        %1346 = vrot.lane.b32.xlu0 %v799, 24
        %v1347 = vpop.permute.xlu0 %1346
        %1348 = vrot.lane.b32.xlu0 %v813, 24
        %v1349 = vpop.permute.xlu0 %1348
        %1350 = vrot.lane.b32.xlu0 %v818, 24
        %v1351 = vpop.permute.xlu0 %1350
        %1352 = vrot.lane.b32.xlu0 %v832, 24
        %v1353 = vpop.permute.xlu0 %1352
        %1354 = vrot.lane.b32.xlu0 %v837, 24
        %v1355 = vpop.permute.xlu0 %1354
        %1356 = vrot.lane.b32.xlu0 %v851, 24
        %v1357 = vpop.permute.xlu0 %1356
        %1358 = vrot.lane.b32.xlu0 %v856, 24
        %v1359 = vpop.permute.xlu0 %1358
        %1360 = vrot.lane.b32.xlu0 %v870, 24
        %v1361 = vpop.permute.xlu0 %1360
        %1362 = vrot.lane.b32.xlu0 %v875, 24
        %v1363 = vpop.permute.xlu0 %1362
        %1364 = vrot.lane.b32.xlu0 %v889, 24
        %v1365 = vpop.permute.xlu0 %1364
        %1366 = vrot.lane.b32.xlu0 %v894, 24
        %v1367 = vpop.permute.xlu0 %1366
        %1368 = vrot.lane.b32.xlu0 %v908, 24
        %v1369 = vpop.permute.xlu0 %1368
        %1370 = vrot.lane.b32.xlu0 %v913, 24
        %v1371 = vpop.permute.xlu0 %1370
        %1372 = vrot.lane.b32.xlu0 %v927, 24
        %v1373 = vpop.permute.xlu0 %1372
        %1374 = vrot.lane.b32.xlu0 %v932, 24
        %v1375 = vpop.permute.xlu0 %1374
        %1376 = vrot.lane.b32.xlu0 %v946, 24
        %v1377 = vpop.permute.xlu0 %1376
        %1378 = vrot.lane.b32.xlu0 %v951, 24
        %v1379 = vpop.permute.xlu0 %1378
        %vm1410 = vcmask 257216
        %1411 = vst.msk [vmem:[#allocation2] sm:$0xf] %vm1410, %v1321
        %vm1412 = vcmask 257216
        %vm1413 = vmand %vm1412, %vm645
        %v1414 = vld [vmem:[#allocation2 + $0x4] sm:$0xf]
        %v1415 = vsel %vm1413, %v1323, %v1414
        %1416 = vst [vmem:[#allocation2 + $0x4] sm:$0xf] %v1415
        %1417 = vst.msk [vmem:[#allocation2 + $0x8] sm:$0xf] %vm1410, %v1325
        %v1418 = vld [vmem:[#allocation2 + $0xc] sm:$0xf]
        %v1419 = vsel %vm1413, %v1327, %v1418
        %1420 = vst [vmem:[#allocation2 + $0xc] sm:$0xf] %v1419
        %1421 = vst.msk [vmem:[#allocation2 + $0x10] sm:$0xf] %vm1410, %v1329
        %v1422 = vld [vmem:[#allocation2 + $0x14] sm:$0xf]
        %v1423 = vsel %vm1413, %v1331, %v1422
        %1424 = vst [vmem:[#allocation2 + $0x14] sm:$0xf] %v1423
        %1425 = vst.msk [vmem:[#allocation2 + $0x18] sm:$0xf] %vm1410, %v1333
        %v1426 = vld [vmem:[#allocation2 + $0x1c] sm:$0xf]
        %v1427 = vsel %vm1413, %v1335, %v1426
        %1428 = vst [vmem:[#allocation2 + $0x1c] sm:$0xf] %v1427
        %1429 = vst.msk [vmem:[#allocation2 + $0x20] sm:$0xf] %vm1410, %v1337
        %v1430 = vld [vmem:[#allocation2 + $0x24] sm:$0xf]
        %v1431 = vsel %vm1413, %v1339, %v1430
        %1432 = vst [vmem:[#allocation2 + $0x24] sm:$0xf] %v1431
        %1433 = vst.msk [vmem:[#allocation2 + $0x28] sm:$0xf] %vm1410, %v1341
        %v1434 = vld [vmem:[#allocation2 + $0x2c] sm:$0xf]
        %v1435 = vsel %vm1413, %v1343, %v1434
        %1436 = vst [vmem:[#allocation2 + $0x2c] sm:$0xf] %v1435
        %1437 = vst.msk [vmem:[#allocation2 + $0x30] sm:$0xf] %vm1410, %v1345
        %v1438 = vld [vmem:[#allocation2 + $0x34] sm:$0xf]
        %v1439 = vsel %vm1413, %v1347, %v1438
        %1440 = vst [vmem:[#allocation2 + $0x34] sm:$0xf] %v1439
        %1441 = vst.msk [vmem:[#allocation2 + $0x38] sm:$0xf] %vm1410, %v1349
        %v1442 = vld [vmem:[#allocation2 + $0x3c] sm:$0xf]
        %v1443 = vsel %vm1413, %v1351, %v1442
        %1444 = vst [vmem:[#allocation2 + $0x3c] sm:$0xf] %v1443
        %1445 = vst.msk [vmem:[#allocation2 + $0x40] sm:$0xf] %vm1410, %v1353
        %v1446 = vld [vmem:[#allocation2 + $0x44] sm:$0xf]
        %v1447 = vsel %vm1413, %v1355, %v1446
        %1448 = vst [vmem:[#allocation2 + $0x44] sm:$0xf] %v1447
        %1449 = vst.msk [vmem:[#allocation2 + $0x48] sm:$0xf] %vm1410, %v1357
        %v1450 = vld [vmem:[#allocation2 + $0x4c] sm:$0xf]
        %v1451 = vsel %vm1413, %v1359, %v1450
        %1452 = vst [vmem:[#allocation2 + $0x4c] sm:$0xf] %v1451
        %1453 = vst.msk [vmem:[#allocation2 + $0x50] sm:$0xf] %vm1410, %v1361
        %v1454 = vld [vmem:[#allocation2 + $0x54] sm:$0xf]
        %v1455 = vsel %vm1413, %v1363, %v1454
        %1456 = vst [vmem:[#allocation2 + $0x54] sm:$0xf] %v1455
        %1457 = vst.msk [vmem:[#allocation2 + $0x58] sm:$0xf] %vm1410, %v1365
        %v1458 = vld [vmem:[#allocation2 + $0x5c] sm:$0xf]
        %v1459 = vsel %vm1413, %v1367, %v1458
        %1460 = vst [vmem:[#allocation2 + $0x5c] sm:$0xf] %v1459
        %1461 = vst.msk [vmem:[#allocation2 + $0x60] sm:$0xf] %vm1410, %v1369
        %v1462 = vld [vmem:[#allocation2 + $0x64] sm:$0xf]
        %v1463 = vsel %vm1413, %v1371, %v1462
        %1464 = vst [vmem:[#allocation2 + $0x64] sm:$0xf] %v1463
        %1465 = vst.msk [vmem:[#allocation2 + $0x68] sm:$0xf] %vm1410, %v1373
        %v1466 = vld [vmem:[#allocation2 + $0x6c] sm:$0xf]
        %v1467 = vsel %vm1413, %v1375, %v1466
        %1468 = vst [vmem:[#allocation2 + $0x6c] sm:$0xf] %v1467
        %1469 = vst.msk [vmem:[#allocation2 + $0x70] sm:$0xf] %vm1410, %v1377
        %v1470 = vld [vmem:[#allocation2 + $0x74] sm:$0xf]
        %v1471 = vsel %vm1413, %v1379, %v1470
        %1472 = vst [vmem:[#allocation2 + $0x74] sm:$0xf] %v1471
        %1473 = vst.msk [vmem:[%s1317] sm:$0xf] %vm1410, 0
        %1474 = vst.msk [vmem:[%s1317 + $0x4] sm:$0xf] %vm1410, 0
        %vm1475 = vcmask 257219
        %vm1476 = vmand %vm1475, %vm1116
        %v1477 = vld [vmem:[#allocation2 + $0x4] sm:$0x8]
        %v1478 = vsel %vm1476, 0, %v1477
        %1479 = vst [vmem:[#allocation2 + $0x4] sm:$0x8] %v1478
        %v1480 = vld [vmem:[#allocation2 + $0xc] sm:$0x8]
        %v1481 = vsel %vm1476, 0, %v1480
        %1482 = vst [vmem:[#allocation2 + $0xc] sm:$0x8] %v1481
        %v1483 = vld [vmem:[#allocation2 + $0x14] sm:$0x8]
        %v1484 = vsel %vm1476, 0, %v1483
        %1485 = vst [vmem:[#allocation2 + $0x14] sm:$0x8] %v1484
        %v1486 = vld [vmem:[#allocation2 + $0x1c] sm:$0x8]
        %v1487 = vsel %vm1476, 0, %v1486
        %1488 = vst [vmem:[#allocation2 + $0x1c] sm:$0x8] %v1487
        %v1489 = vld [vmem:[#allocation2 + $0x24] sm:$0x8]
        %v1490 = vsel %vm1476, 0, %v1489
        %1491 = vst [vmem:[#allocation2 + $0x24] sm:$0x8] %v1490
        %v1492 = vld [vmem:[#allocation2 + $0x2c] sm:$0x8]
        %v1493 = vsel %vm1476, 0, %v1492
        %1494 = vst [vmem:[#allocation2 + $0x2c] sm:$0x8] %v1493
        %v1495 = vld [vmem:[#allocation2 + $0x34] sm:$0x8]
        %v1496 = vsel %vm1476, 0, %v1495
        %1497 = vst [vmem:[#allocation2 + $0x34] sm:$0x8] %v1496
        %v1498 = vld [vmem:[#allocation2 + $0x3c] sm:$0x8]
        %v1499 = vsel %vm1476, 0, %v1498
        %1500 = vst [vmem:[#allocation2 + $0x3c] sm:$0x8] %v1499
        %v1501 = vld [vmem:[#allocation2 + $0x44] sm:$0x8]
        %v1502 = vsel %vm1476, 0, %v1501
        %1503 = vst [vmem:[#allocation2 + $0x44] sm:$0x8] %v1502
        %v1504 = vld [vmem:[#allocation2 + $0x4c] sm:$0x8]
        %v1505 = vsel %vm1476, 0, %v1504
        %1506 = vst [vmem:[#allocation2 + $0x4c] sm:$0x8] %v1505
        %v1507 = vld [vmem:[#allocation2 + $0x54] sm:$0x8]
        %v1508 = vsel %vm1476, 0, %v1507
        %1509 = vst [vmem:[#allocation2 + $0x54] sm:$0x8] %v1508
        %v1510 = vld [vmem:[#allocation2 + $0x5c] sm:$0x8]
        %v1511 = vsel %vm1476, 0, %v1510
        %1512 = vst [vmem:[#allocation2 + $0x5c] sm:$0x8] %v1511
        %v1513 = vld [vmem:[#allocation2 + $0x64] sm:$0x8]
        %v1514 = vsel %vm1476, 0, %v1513
        %1515 = vst [vmem:[#allocation2 + $0x64] sm:$0x8] %v1514
        %v1516 = vld [vmem:[#allocation2 + $0x6c] sm:$0x8]
        %v1517 = vsel %vm1476, 0, %v1516
        %1518 = vst [vmem:[#allocation2 + $0x6c] sm:$0x8] %v1517
        %v1519 = vld [vmem:[#allocation2 + $0x74] sm:$0x8]
        %v1520 = vsel %vm1476, 0, %v1519
        %1521 = vst [vmem:[#allocation2 + $0x74] sm:$0x8] %v1520
        %v1522 = vld [vmem:[#allocation2] sm:$0xf]
        %v1523 = vld [vmem:[#allocation2 + $0x4] sm:$0xf]
        %v1524 = vld [vmem:[#allocation2 + $0x8] sm:$0xf]
        %v1525 = vld [vmem:[#allocation2 + $0xc] sm:$0xf]
        %v1526 = vld [vmem:[#allocation2 + $0x10] sm:$0xf]
        %v1527 = vld [vmem:[#allocation2 + $0x14] sm:$0xf]
        %v1528 = vld [vmem:[#allocation2 + $0x18] sm:$0xf]
        %v1529 = vld [vmem:[#allocation2 + $0x1c] sm:$0xf]
        %v1530 = vld [vmem:[#allocation2 + $0x20] sm:$0xf]
        %v1531 = vld [vmem:[#allocation2 + $0x24] sm:$0xf]
        %v1532 = vld [vmem:[#allocation2 + $0x28] sm:$0xf]
        %v1533 = vld [vmem:[#allocation2 + $0x2c] sm:$0xf]
        %v1534 = vld [vmem:[#allocation2 + $0x30] sm:$0xf]
        %v1535 = vld [vmem:[#allocation2 + $0x34] sm:$0xf]
        %v1536 = vld [vmem:[#allocation2 + $0x38] sm:$0xf]
        %v1537 = vld [vmem:[#allocation2 + $0x3c] sm:$0xf]
        %v1538 = vld [vmem:[#allocation2 + $0x40] sm:$0xf]
        %v1539 = vld [vmem:[#allocation2 + $0x44] sm:$0xf]
        %v1540 = vld [vmem:[#allocation2 + $0x48] sm:$0xf]
        %v1541 = vld [vmem:[#allocation2 + $0x4c] sm:$0xf]
        %v1542 = vld [vmem:[#allocation2 + $0x50] sm:$0xf]
        %v1543 = vld [vmem:[#allocation2 + $0x54] sm:$0xf]
        %v1544 = vld [vmem:[#allocation2 + $0x58] sm:$0xf]
        %v1545 = vld [vmem:[#allocation2 + $0x5c] sm:$0xf]
        %v1546 = vld [vmem:[#allocation2 + $0x60] sm:$0xf]
        %v1547 = vld [vmem:[#allocation2 + $0x64] sm:$0xf]
        %v1548 = vld [vmem:[#allocation2 + $0x68] sm:$0xf]
        %v1549 = vld [vmem:[#allocation2 + $0x6c] sm:$0xf]
        %v1550 = vld [vmem:[#allocation2 + $0x70] sm:$0xf]
        %v1551 = vld [vmem:[#allocation2 + $0x74] sm:$0xf]
        %v1552 = vld [vmem:[#allocation2 + $0x78] sm:$0xf]
        %v1553 = vld [vmem:[#allocation2 + $0x7c] sm:$0xf]
        %v1554 = vld [vmem:[%s3] sm:$0xf]
        %v1555 = vld [vmem:[%s3 + $0x4] sm:$0xf]
        %v1556 = vld [vmem:[%s3 + $0x8] sm:$0xf]
        %v1557 = vld [vmem:[%s3 + $0xc] sm:$0xf]
        %v1558 = vld [vmem:[%s4] sm:$0x1]
        %v1560 = vperm.slane %v1558, 0
        %v1594 = vunpack.c.l.b16 %v1522
        %v1595 = vunpack.c.l.b16 %v1523
        %v1596 = vunpack.c.l.b16 %v1524
        %v1597 = vunpack.c.l.b16 %v1525
        %v1598 = vunpack.c.l.b16 %v1526
        %v1599 = vunpack.c.l.b16 %v1527
        %v1600 = vunpack.c.l.b16 %v1528
        %v1601 = vunpack.c.l.b16 %v1529
        %v1602 = vunpack.c.l.b16 %v1530
        %v1603 = vunpack.c.l.b16 %v1531
        %v1604 = vunpack.c.l.b16 %v1532
        %v1605 = vunpack.c.l.b16 %v1533
        %v1606 = vunpack.c.l.b16 %v1534
        %v1607 = vunpack.c.l.b16 %v1535
        %v1608 = vunpack.c.l.b16 %v1536
        %v1609 = vunpack.c.l.b16 %v1537
        %v1610 = vunpack.c.l.b16 %v1538
        %v1611 = vunpack.c.l.b16 %v1539
        %v1612 = vunpack.c.l.b16 %v1540
        %v1613 = vunpack.c.l.b16 %v1541
        %v1614 = vunpack.c.l.b16 %v1542
        %v1615 = vunpack.c.l.b16 %v1543
        %v1616 = vunpack.c.l.b16 %v1544
        %v1617 = vunpack.c.l.b16 %v1545
        %v1618 = vunpack.c.l.b16 %v1546
        %v1619 = vunpack.c.l.b16 %v1547
        %v1620 = vunpack.c.l.b16 %v1548
        %v1621 = vunpack.c.l.b16 %v1549
        %v1622 = vunpack.c.l.b16 %v1550
        %v1623 = vunpack.c.l.b16 %v1551
        %v1624 = vunpack.c.l.b16 %v1552
        %v1625 = vunpack.c.l.b16 %v1553
        %v1626 = vpack.c.b16 %v1595, %v1594
        %v1627 = vpack.c.b16 %v1597, %v1596
        %v1628 = vpack.c.b16 %v1599, %v1598
        %v1629 = vpack.c.b16 %v1601, %v1600
        %v1630 = vpack.c.b16 %v1603, %v1602
        %v1631 = vpack.c.b16 %v1605, %v1604
        %v1632 = vpack.c.b16 %v1607, %v1606
        %v1633 = vpack.c.b16 %v1609, %v1608
        %v1634 = vpack.c.b16 %v1611, %v1610
        %v1635 = vpack.c.b16 %v1613, %v1612
        %v1636 = vpack.c.b16 %v1615, %v1614
        %v1637 = vpack.c.b16 %v1617, %v1616
        %v1638 = vpack.c.b16 %v1619, %v1618
        %v1639 = vpack.c.b16 %v1621, %v1620
        %v1640 = vpack.c.b16 %v1623, %v1622
        %v1641 = vpack.c.b16 %v1625, %v1624
        %v1646 = vunpack.c.l.b16 %v1554
        %v1647 = vunpack.c.l.b16 %v1555
        %v1648 = vunpack.c.l.b16 %v1556
        %v1649 = vunpack.c.l.b16 %v1557
        %v1650 = vpack.c.b16 %v1647, %v1646
        %v1651 = vpack.c.b16 %v1649, %v1648
        %v1655 = vsel %vm410, %v1626, 0
        %v1658 = vsel %vm410, %v1627, 0
        %v1661 = vsel %vm410, %v1628, 0
        %v1664 = vsel %vm410, %v1629, 0
        %v1667 = vsel %vm410, %v1630, 0
        %v1670 = vsel %vm410, %v1631, 0
        %v1673 = vsel %vm410, %v1632, 0
        %v1676 = vsel %vm410, %v1633, 0
        %v1679 = vsel %vm410, %v1634, 0
        %v1682 = vsel %vm410, %v1635, 0
        %v1685 = vsel %vm410, %v1636, 0
        %v1688 = vsel %vm410, %v1637, 0
        %v1691 = vsel %vm410, %v1638, 0
        %v1694 = vsel %vm410, %v1639, 0
        %v1697 = vsel %vm410, %v1640, 0
        %v1700 = vsel %vm410, %v1641, 0
        %1702 = vmatpush.bf16.msra.mxu0 0
        %1703 = vmatpush.bf16.msra.mxu0 0
        %1704 = vmatpush.bf16.msra.mxu0 0
        %1705 = vmatpush.bf16.msra.mxu0 0
        %1706 = vmatpush.bf16.msra.mxu0 0
        %1707 = vmatpush.bf16.msra.mxu0 0
        %1708 = vmatpush.bf16.msra.mxu0 %v1651
        %1709 = vmatpush.bf16.msra.mxu0 %v1650
        %1710 = vmatmul.bf16.gmra.mxu0 %v1655
        %v1711 = vpop.f32.mrf.mxu0
        %v1712 = vadd.f32 %v1560, %v1711
        %v1713 = vpop.f32.mrf.mxu0
        %v1714 = vadd.f32 %v1560, %v1713
        %1715 = vmatmul.bf16.gmra.mxu0 %v1658
        %v1716 = vpop.f32.mrf.mxu0
        %v1717 = vadd.f32 %v1560, %v1716
        %v1718 = vpop.f32.mrf.mxu0
        %v1719 = vadd.f32 %v1560, %v1718
        %1720 = vmatmul.bf16.gmra.mxu0 %v1661
        %v1721 = vpop.f32.mrf.mxu0
        %v1722 = vadd.f32 %v1560, %v1721
        %v1723 = vpop.f32.mrf.mxu0
        %v1724 = vadd.f32 %v1560, %v1723
        %1725 = vmatmul.bf16.gmra.mxu0 %v1664
        %v1726 = vpop.f32.mrf.mxu0
        %v1727 = vadd.f32 %v1560, %v1726
        %v1728 = vpop.f32.mrf.mxu0
        %v1729 = vadd.f32 %v1560, %v1728
        %1730 = vmatmul.bf16.gmra.mxu0 %v1667
        %v1731 = vpop.f32.mrf.mxu0
        %v1732 = vadd.f32 %v1560, %v1731
        %v1733 = vpop.f32.mrf.mxu0
        %v1734 = vadd.f32 %v1560, %v1733
        %1735 = vmatmul.bf16.gmra.mxu0 %v1670
        %v1736 = vpop.f32.mrf.mxu0
        %v1737 = vadd.f32 %v1560, %v1736
        %v1738 = vpop.f32.mrf.mxu0
        %v1739 = vadd.f32 %v1560, %v1738
        %1740 = vmatmul.bf16.gmra.mxu0 %v1673
        %v1741 = vpop.f32.mrf.mxu0
        %v1742 = vadd.f32 %v1560, %v1741
        %v1743 = vpop.f32.mrf.mxu0
        %v1744 = vadd.f32 %v1560, %v1743
        %1745 = vmatmul.bf16.gmra.mxu0 %v1676
        %v1746 = vpop.f32.mrf.mxu0
        %v1747 = vadd.f32 %v1560, %v1746
        %v1748 = vpop.f32.mrf.mxu0
        %v1749 = vadd.f32 %v1560, %v1748
        %1750 = vmatmul.bf16.gmra.mxu0 %v1679
        %v1751 = vpop.f32.mrf.mxu0
        %v1752 = vadd.f32 %v1560, %v1751
        %v1753 = vpop.f32.mrf.mxu0
        %v1754 = vadd.f32 %v1560, %v1753
        %1755 = vmatmul.bf16.gmra.mxu0 %v1682
        %v1756 = vpop.f32.mrf.mxu0
        %v1757 = vadd.f32 %v1560, %v1756
        %v1758 = vpop.f32.mrf.mxu0
        %v1759 = vadd.f32 %v1560, %v1758
        %1760 = vmatmul.bf16.gmra.mxu0 %v1685
        %v1761 = vpop.f32.mrf.mxu0
        %v1762 = vadd.f32 %v1560, %v1761
        %v1763 = vpop.f32.mrf.mxu0
        %v1764 = vadd.f32 %v1560, %v1763
        %1765 = vmatmul.bf16.gmra.mxu0 %v1688
        %v1766 = vpop.f32.mrf.mxu0
        %v1767 = vadd.f32 %v1560, %v1766
        %v1768 = vpop.f32.mrf.mxu0
        %v1769 = vadd.f32 %v1560, %v1768
        %1770 = vmatmul.bf16.gmra.mxu0 %v1691
        %v1771 = vpop.f32.mrf.mxu0
        %v1772 = vadd.f32 %v1560, %v1771
        %v1773 = vpop.f32.mrf.mxu0
        %v1774 = vadd.f32 %v1560, %v1773
        %1775 = vmatmul.bf16.gmra.mxu0 %v1694
        %v1776 = vpop.f32.mrf.mxu0
        %v1777 = vadd.f32 %v1560, %v1776
        %v1778 = vpop.f32.mrf.mxu0
        %v1779 = vadd.f32 %v1560, %v1778
        %1780 = vmatmul.bf16.gmra.mxu0 %v1697
        %v1781 = vpop.f32.mrf.mxu0
        %v1782 = vadd.f32 %v1560, %v1781
        %v1783 = vpop.f32.mrf.mxu0
        %v1784 = vadd.f32 %v1560, %v1783
        %1785 = vmatmul.bf16.gmra.mxu0 %v1700
        %v1786 = vpop.f32.mrf.mxu0
        %v1787 = vadd.f32 %v1560, %v1786
        %v1788 = vpop.f32.mrf.mxu0
        %v1789 = vadd.f32 %v1560, %v1788
        %1790 = vdwg.mxu0
        %v1791 = vmax.f32 %v1712, 0.0
        %v1792 = vmax.f32 %v1714, 0.0
        %v1793 = vmax.f32 %v1717, 0.0
        %v1794 = vmax.f32 %v1719, 0.0
        %v1795 = vmax.f32 %v1722, 0.0
        %v1796 = vmax.f32 %v1724, 0.0
        %v1797 = vmax.f32 %v1727, 0.0
        %v1798 = vmax.f32 %v1729, 0.0
        %v1799 = vmax.f32 %v1732, 0.0
        %v1800 = vmax.f32 %v1734, 0.0
        %v1801 = vmax.f32 %v1737, 0.0
        %v1802 = vmax.f32 %v1739, 0.0
        %v1803 = vmax.f32 %v1742, 0.0
        %v1804 = vmax.f32 %v1744, 0.0
        %v1805 = vmax.f32 %v1747, 0.0
        %v1806 = vmax.f32 %v1749, 0.0
        %v1807 = vmax.f32 %v1752, 0.0
        %v1808 = vmax.f32 %v1754, 0.0
        %v1809 = vmax.f32 %v1757, 0.0
        %v1810 = vmax.f32 %v1759, 0.0
        %v1811 = vmax.f32 %v1762, 0.0
        %v1812 = vmax.f32 %v1764, 0.0
        %v1813 = vmax.f32 %v1767, 0.0
        %v1814 = vmax.f32 %v1769, 0.0
        %v1815 = vmax.f32 %v1772, 0.0
        %v1816 = vmax.f32 %v1774, 0.0
        %v1817 = vmax.f32 %v1777, 0.0
        %v1818 = vmax.f32 %v1779, 0.0
        %v1819 = vmax.f32 %v1782, 0.0
        %v1820 = vmax.f32 %v1784, 0.0
        %v1821 = vmax.f32 %v1787, 0.0
        %v1822 = vmax.f32 %v1789, 0.0
        %v1823 = vpack.c.bf16 %v1791, %v1791
        %v1824 = vpack.c.bf16 %v1792, %v1792
        %v1825 = vpack.c.bf16 %v1793, %v1793
        %v1826 = vpack.c.bf16 %v1794, %v1794
        %v1827 = vpack.c.bf16 %v1795, %v1795
        %v1828 = vpack.c.bf16 %v1796, %v1796
        %v1829 = vpack.c.bf16 %v1797, %v1797
        %v1830 = vpack.c.bf16 %v1798, %v1798
        %v1831 = vpack.c.bf16 %v1799, %v1799
        %v1832 = vpack.c.bf16 %v1800, %v1800
        %v1833 = vpack.c.bf16 %v1801, %v1801
        %v1834 = vpack.c.bf16 %v1802, %v1802
        %v1835 = vpack.c.bf16 %v1803, %v1803
        %v1836 = vpack.c.bf16 %v1804, %v1804
        %v1837 = vpack.c.bf16 %v1805, %v1805
        %v1838 = vpack.c.bf16 %v1806, %v1806
        %v1839 = vpack.c.bf16 %v1807, %v1807
        %v1840 = vpack.c.bf16 %v1808, %v1808
        %v1841 = vpack.c.bf16 %v1809, %v1809
        %v1842 = vpack.c.bf16 %v1810, %v1810
        %v1843 = vpack.c.bf16 %v1811, %v1811
        %v1844 = vpack.c.bf16 %v1812, %v1812
        %v1845 = vpack.c.bf16 %v1813, %v1813
        %v1846 = vpack.c.bf16 %v1814, %v1814
        %v1847 = vpack.c.bf16 %v1815, %v1815
        %v1848 = vpack.c.bf16 %v1816, %v1816
        %v1849 = vpack.c.bf16 %v1817, %v1817
        %v1850 = vpack.c.bf16 %v1818, %v1818
        %v1851 = vpack.c.bf16 %v1819, %v1819
        %v1852 = vpack.c.bf16 %v1820, %v1820
        %v1853 = vpack.c.bf16 %v1821, %v1821
        %v1854 = vpack.c.bf16 %v1822, %v1822
        %v1855 = vld [vmem:[%s5] sm:$0xf]
        %v1856 = vld [vmem:[%s5 + $0x4] sm:$0xf]
        %v1857 = vld [vmem:[%s6] sm:$0x1]
        %v1859 = vperm.slane %v1857, 0
        %v1893 = vunpack.c.l.b16 %v1823
        %v1894 = vunpack.c.l.b16 %v1824
        %v1895 = vunpack.c.l.b16 %v1825
        %v1896 = vunpack.c.l.b16 %v1826
        %v1897 = vunpack.c.l.b16 %v1827
        %v1898 = vunpack.c.l.b16 %v1828
        %v1899 = vunpack.c.l.b16 %v1829
        %v1900 = vunpack.c.l.b16 %v1830
        %v1901 = vunpack.c.l.b16 %v1831
        %v1902 = vunpack.c.l.b16 %v1832
        %v1903 = vunpack.c.l.b16 %v1833
        %v1904 = vunpack.c.l.b16 %v1834
        %v1905 = vunpack.c.l.b16 %v1835
        %v1906 = vunpack.c.l.b16 %v1836
        %v1907 = vunpack.c.l.b16 %v1837
        %v1908 = vunpack.c.l.b16 %v1838
        %v1909 = vunpack.c.l.b16 %v1839
        %v1910 = vunpack.c.l.b16 %v1840
        %v1911 = vunpack.c.l.b16 %v1841
        %v1912 = vunpack.c.l.b16 %v1842
        %v1913 = vunpack.c.l.b16 %v1843
        %v1914 = vunpack.c.l.b16 %v1844
        %v1915 = vunpack.c.l.b16 %v1845
        %v1916 = vunpack.c.l.b16 %v1846
        %v1917 = vunpack.c.l.b16 %v1847
        %v1918 = vunpack.c.l.b16 %v1848
        %v1919 = vunpack.c.l.b16 %v1849
        %v1920 = vunpack.c.l.b16 %v1850
        %v1921 = vunpack.c.l.b16 %v1851
        %v1922 = vunpack.c.l.b16 %v1852
        %v1923 = vunpack.c.l.b16 %v1853
        %v1924 = vunpack.c.l.b16 %v1854
        %v1925 = vpack.c.b16 %v1894, %v1893
        %v1926 = vpack.c.b16 %v1896, %v1895
        %v1927 = vpack.c.b16 %v1898, %v1897
        %v1928 = vpack.c.b16 %v1900, %v1899
        %v1929 = vpack.c.b16 %v1902, %v1901
        %v1930 = vpack.c.b16 %v1904, %v1903
        %v1931 = vpack.c.b16 %v1906, %v1905
        %v1932 = vpack.c.b16 %v1908, %v1907
        %v1933 = vpack.c.b16 %v1910, %v1909
        %v1934 = vpack.c.b16 %v1912, %v1911
        %v1935 = vpack.c.b16 %v1914, %v1913
        %v1936 = vpack.c.b16 %v1916, %v1915
        %v1937 = vpack.c.b16 %v1918, %v1917
        %v1938 = vpack.c.b16 %v1920, %v1919
        %v1939 = vpack.c.b16 %v1922, %v1921
        %v1940 = vpack.c.b16 %v1924, %v1923
        %v1943 = vunpack.c.l.b16 %v1855
        %v1944 = vunpack.c.l.b16 %v1856
        %v1945 = vpack.c.b16 %v1944, %v1943
        %vm1947 = vcmask 130048
        %v1949 = vsel %vm1947, %v1925, 0
        %v1952 = vsel %vm1947, %v1926, 0
        %v1955 = vsel %vm1947, %v1927, 0
        %v1958 = vsel %vm1947, %v1928, 0
        %v1961 = vsel %vm1947, %v1929, 0
        %v1964 = vsel %vm1947, %v1930, 0
        %v1967 = vsel %vm1947, %v1931, 0
        %v1970 = vsel %vm1947, %v1932, 0
        %v1973 = vsel %vm1947, %v1933, 0
        %v1976 = vsel %vm1947, %v1934, 0
        %v1979 = vsel %vm1947, %v1935, 0
        %v1982 = vsel %vm1947, %v1936, 0
        %v1985 = vsel %vm1947, %v1937, 0
        %v1988 = vsel %vm1947, %v1938, 0
        %v1991 = vsel %vm1947, %v1939, 0
        %v1994 = vsel %vm1947, %v1940, 0
        %1996 = vmatpush.bf16.msra.mxu0 0
        %1997 = vmatpush.bf16.msra.mxu0 0
        %1998 = vmatpush.bf16.msra.mxu0 0
        %1999 = vmatpush.bf16.msra.mxu0 0
        %2000 = vmatpush.bf16.msra.mxu0 0
        %2001 = vmatpush.bf16.msra.mxu0 0
        %2002 = vmatpush.bf16.msra.mxu0 0
        %2003 = vmatpush.bf16.msra.mxu0 %v1945
        %2004 = vmatmul.bf16.gmra.mxu0 %v1949
        %v2005 = vpop.f32.mrf.mxu0
        %v2006 = vadd.f32 %v1859, %v2005
        %v2007 = vpop.f32.mrf.mxu0
        %v2008 = vadd.f32 %v1859, %v2007
        %2009 = vmatmul.bf16.gmra.mxu0 %v1952
        %v2010 = vpop.f32.mrf.mxu0
        %v2011 = vadd.f32 %v1859, %v2010
        %v2012 = vpop.f32.mrf.mxu0
        %v2013 = vadd.f32 %v1859, %v2012
        %2014 = vmatmul.bf16.gmra.mxu0 %v1955
        %v2015 = vpop.f32.mrf.mxu0
        %v2016 = vadd.f32 %v1859, %v2015
        %v2017 = vpop.f32.mrf.mxu0
        %v2018 = vadd.f32 %v1859, %v2017
        %2019 = vmatmul.bf16.gmra.mxu0 %v1958
        %v2020 = vpop.f32.mrf.mxu0
        %v2021 = vadd.f32 %v1859, %v2020
        %v2022 = vpop.f32.mrf.mxu0
        %v2023 = vadd.f32 %v1859, %v2022
        %2024 = vmatmul.bf16.gmra.mxu0 %v1961
        %v2025 = vpop.f32.mrf.mxu0
        %v2026 = vadd.f32 %v1859, %v2025
        %v2027 = vpop.f32.mrf.mxu0
        %v2028 = vadd.f32 %v1859, %v2027
        %2029 = vmatmul.bf16.gmra.mxu0 %v1964
        %v2030 = vpop.f32.mrf.mxu0
        %v2031 = vadd.f32 %v1859, %v2030
        %v2032 = vpop.f32.mrf.mxu0
        %v2033 = vadd.f32 %v1859, %v2032
        %2034 = vmatmul.bf16.gmra.mxu0 %v1967
        %v2035 = vpop.f32.mrf.mxu0
        %v2036 = vadd.f32 %v1859, %v2035
        %v2037 = vpop.f32.mrf.mxu0
        %v2038 = vadd.f32 %v1859, %v2037
        %2039 = vmatmul.bf16.gmra.mxu0 %v1970
        %v2040 = vpop.f32.mrf.mxu0
        %v2041 = vadd.f32 %v1859, %v2040
        %v2042 = vpop.f32.mrf.mxu0
        %v2043 = vadd.f32 %v1859, %v2042
        %2044 = vmatmul.bf16.gmra.mxu0 %v1973
        %v2045 = vpop.f32.mrf.mxu0
        %v2046 = vadd.f32 %v1859, %v2045
        %v2047 = vpop.f32.mrf.mxu0
        %v2048 = vadd.f32 %v1859, %v2047
        %2049 = vmatmul.bf16.gmra.mxu0 %v1976
        %v2050 = vpop.f32.mrf.mxu0
        %v2051 = vadd.f32 %v1859, %v2050
        %v2052 = vpop.f32.mrf.mxu0
        %v2053 = vadd.f32 %v1859, %v2052
        %2054 = vmatmul.bf16.gmra.mxu0 %v1979
        %v2055 = vpop.f32.mrf.mxu0
        %v2056 = vadd.f32 %v1859, %v2055
        %v2057 = vpop.f32.mrf.mxu0
        %v2058 = vadd.f32 %v1859, %v2057
        %2059 = vmatmul.bf16.gmra.mxu0 %v1982
        %v2060 = vpop.f32.mrf.mxu0
        %v2061 = vadd.f32 %v1859, %v2060
        %v2062 = vpop.f32.mrf.mxu0
        %v2063 = vadd.f32 %v1859, %v2062
        %2064 = vmatmul.bf16.gmra.mxu0 %v1985
        %v2065 = vpop.f32.mrf.mxu0
        %v2066 = vadd.f32 %v1859, %v2065
        %v2067 = vpop.f32.mrf.mxu0
        %v2068 = vadd.f32 %v1859, %v2067
        %2069 = vmatmul.bf16.gmra.mxu0 %v1988
        %v2070 = vpop.f32.mrf.mxu0
        %v2071 = vadd.f32 %v1859, %v2070
        %v2072 = vpop.f32.mrf.mxu0
        %v2073 = vadd.f32 %v1859, %v2072
        %2074 = vmatmul.bf16.gmra.mxu0 %v1991
        %v2075 = vpop.f32.mrf.mxu0
        %v2076 = vadd.f32 %v1859, %v2075
        %v2077 = vpop.f32.mrf.mxu0
        %v2078 = vadd.f32 %v1859, %v2077
        %2079 = vmatmul.bf16.gmra.mxu0 %v1994
        %v2080 = vpop.f32.mrf.mxu0
        %v2081 = vadd.f32 %v1859, %v2080
        %v2082 = vpop.f32.mrf.mxu0
        %v2083 = vadd.f32 %v1859, %v2082
        %2084 = vdwg.mxu0
        %v2085 = vmax.f32 %v2006, 0.0
        %v2086 = vmax.f32 %v2008, 0.0
        %v2087 = vmax.f32 %v2011, 0.0
        %v2088 = vmax.f32 %v2013, 0.0
        %v2089 = vmax.f32 %v2016, 0.0
        %v2090 = vmax.f32 %v2018, 0.0
        %v2091 = vmax.f32 %v2021, 0.0
        %v2092 = vmax.f32 %v2023, 0.0
        %v2093 = vmax.f32 %v2026, 0.0
        %v2094 = vmax.f32 %v2028, 0.0
        %v2095 = vmax.f32 %v2031, 0.0
        %v2096 = vmax.f32 %v2033, 0.0
        %v2097 = vmax.f32 %v2036, 0.0
        %v2098 = vmax.f32 %v2038, 0.0
        %v2099 = vmax.f32 %v2041, 0.0
        %v2100 = vmax.f32 %v2043, 0.0
        %v2101 = vmax.f32 %v2046, 0.0
        %v2102 = vmax.f32 %v2048, 0.0
        %v2103 = vmax.f32 %v2051, 0.0
        %v2104 = vmax.f32 %v2053, 0.0
        %v2105 = vmax.f32 %v2056, 0.0
        %v2106 = vmax.f32 %v2058, 0.0
        %v2107 = vmax.f32 %v2061, 0.0
        %v2108 = vmax.f32 %v2063, 0.0
        %v2109 = vmax.f32 %v2066, 0.0
        %v2110 = vmax.f32 %v2068, 0.0
        %v2111 = vmax.f32 %v2071, 0.0
        %v2112 = vmax.f32 %v2073, 0.0
        %v2113 = vmax.f32 %v2076, 0.0
        %v2114 = vmax.f32 %v2078, 0.0
        %v2115 = vmax.f32 %v2081, 0.0
        %v2116 = vmax.f32 %v2083, 0.0
        %2117 = vrot.lane.b32.xlu0 %v1925, 112
        %v2118 = vpop.permute.xlu0 %2117
        %2119 = vrot.lane.b32.xlu0 %v1926, 112
        %v2120 = vpop.permute.xlu0 %2119
        %2121 = vrot.lane.b32.xlu0 %v1927, 112
        %v2122 = vpop.permute.xlu0 %2121
        %2123 = vrot.lane.b32.xlu0 %v1928, 112
        %v2124 = vpop.permute.xlu0 %2123
        %2125 = vrot.lane.b32.xlu0 %v1929, 112
        %v2126 = vpop.permute.xlu0 %2125
        %2127 = vrot.lane.b32.xlu0 %v1930, 112
        %v2128 = vpop.permute.xlu0 %2127
        %2129 = vrot.lane.b32.xlu0 %v1931, 112
        %v2130 = vpop.permute.xlu0 %2129
        %2131 = vrot.lane.b32.xlu0 %v1932, 112
        %v2132 = vpop.permute.xlu0 %2131
        %2133 = vrot.lane.b32.xlu0 %v1933, 112
        %v2134 = vpop.permute.xlu0 %2133
        %2135 = vrot.lane.b32.xlu0 %v1934, 112
        %v2136 = vpop.permute.xlu0 %2135
        %2137 = vrot.lane.b32.xlu0 %v1935, 112
        %v2138 = vpop.permute.xlu0 %2137
        %2139 = vrot.lane.b32.xlu0 %v1936, 112
        %v2140 = vpop.permute.xlu0 %2139
        %2141 = vrot.lane.b32.xlu0 %v1937, 112
        %v2142 = vpop.permute.xlu0 %2141
        %2143 = vrot.lane.b32.xlu0 %v1938, 112
        %v2144 = vpop.permute.xlu0 %2143
        %2145 = vrot.lane.b32.xlu0 %v1939, 112
        %v2146 = vpop.permute.xlu0 %2145
        %2147 = vrot.lane.b32.xlu0 %v1940, 112
        %v2148 = vpop.permute.xlu0 %2147
        %v2150 = vsel %vm1947, %v2118, 0
        %v2153 = vsel %vm1947, %v2120, 0
        %v2156 = vsel %vm1947, %v2122, 0
        %v2159 = vsel %vm1947, %v2124, 0
        %v2162 = vsel %vm1947, %v2126, 0
        %v2165 = vsel %vm1947, %v2128, 0
        %v2168 = vsel %vm1947, %v2130, 0
        %v2171 = vsel %vm1947, %v2132, 0
        %v2174 = vsel %vm1947, %v2134, 0
        %v2177 = vsel %vm1947, %v2136, 0
        %v2180 = vsel %vm1947, %v2138, 0
        %v2183 = vsel %vm1947, %v2140, 0
        %v2186 = vsel %vm1947, %v2142, 0
        %v2189 = vsel %vm1947, %v2144, 0
        %v2192 = vsel %vm1947, %v2146, 0
        %v2195 = vsel %vm1947, %v2148, 0
        %2197 = vmatpush.bf16.msra.mxu0 0
        %2198 = vmatpush.bf16.msra.mxu0 0
        %2199 = vmatpush.bf16.msra.mxu0 0
        %2200 = vmatpush.bf16.msra.mxu0 0
        %2201 = vmatpush.bf16.msra.mxu0 0
        %2202 = vmatpush.bf16.msra.mxu0 0
        %2203 = vmatpush.bf16.msra.mxu0 0
        %2204 = vmatpush.bf16.msra.mxu0 %v1945
        %2205 = vmatmul.bf16.gmra.mxu0 %v2150
        %v2206 = vpop.f32.mrf.mxu0
        %v2207 = vadd.f32 %v1859, %v2206
        %v2208 = vpop.f32.mrf.mxu0
        %v2209 = vadd.f32 %v1859, %v2208
        %2210 = vmatmul.bf16.gmra.mxu0 %v2153
        %v2211 = vpop.f32.mrf.mxu0
        %v2212 = vadd.f32 %v1859, %v2211
        %v2213 = vpop.f32.mrf.mxu0
        %v2214 = vadd.f32 %v1859, %v2213
        %2215 = vmatmul.bf16.gmra.mxu0 %v2156
        %v2216 = vpop.f32.mrf.mxu0
        %v2217 = vadd.f32 %v1859, %v2216
        %v2218 = vpop.f32.mrf.mxu0
        %v2219 = vadd.f32 %v1859, %v2218
        %2220 = vmatmul.bf16.gmra.mxu0 %v2159
        %v2221 = vpop.f32.mrf.mxu0
        %v2222 = vadd.f32 %v1859, %v2221
        %v2223 = vpop.f32.mrf.mxu0
        %v2224 = vadd.f32 %v1859, %v2223
        %2225 = vmatmul.bf16.gmra.mxu0 %v2162
        %v2226 = vpop.f32.mrf.mxu0
        %v2227 = vadd.f32 %v1859, %v2226
        %v2228 = vpop.f32.mrf.mxu0
        %v2229 = vadd.f32 %v1859, %v2228
        %2230 = vmatmul.bf16.gmra.mxu0 %v2165
        %v2231 = vpop.f32.mrf.mxu0
        %v2232 = vadd.f32 %v1859, %v2231
        %v2233 = vpop.f32.mrf.mxu0
        %v2234 = vadd.f32 %v1859, %v2233
        %2235 = vmatmul.bf16.gmra.mxu0 %v2168
        %v2236 = vpop.f32.mrf.mxu0
        %v2237 = vadd.f32 %v1859, %v2236
        %v2238 = vpop.f32.mrf.mxu0
        %v2239 = vadd.f32 %v1859, %v2238
        %2240 = vmatmul.bf16.gmra.mxu0 %v2171
        %v2241 = vpop.f32.mrf.mxu0
        %v2242 = vadd.f32 %v1859, %v2241
        %v2243 = vpop.f32.mrf.mxu0
        %v2244 = vadd.f32 %v1859, %v2243
        %2245 = vmatmul.bf16.gmra.mxu0 %v2174
        %v2246 = vpop.f32.mrf.mxu0
        %v2247 = vadd.f32 %v1859, %v2246
        %v2248 = vpop.f32.mrf.mxu0
        %v2249 = vadd.f32 %v1859, %v2248
        %2250 = vmatmul.bf16.gmra.mxu0 %v2177
        %v2251 = vpop.f32.mrf.mxu0
        %v2252 = vadd.f32 %v1859, %v2251
        %v2253 = vpop.f32.mrf.mxu0
        %v2254 = vadd.f32 %v1859, %v2253
        %2255 = vmatmul.bf16.gmra.mxu0 %v2180
        %v2256 = vpop.f32.mrf.mxu0
        %v2257 = vadd.f32 %v1859, %v2256
        %v2258 = vpop.f32.mrf.mxu0
        %v2259 = vadd.f32 %v1859, %v2258
        %2260 = vmatmul.bf16.gmra.mxu0 %v2183
        %v2261 = vpop.f32.mrf.mxu0
        %v2262 = vadd.f32 %v1859, %v2261
        %v2263 = vpop.f32.mrf.mxu0
        %v2264 = vadd.f32 %v1859, %v2263
        %2265 = vmatmul.bf16.gmra.mxu0 %v2186
        %v2266 = vpop.f32.mrf.mxu0
        %v2267 = vadd.f32 %v1859, %v2266
        %v2268 = vpop.f32.mrf.mxu0
        %v2269 = vadd.f32 %v1859, %v2268
        %2270 = vmatmul.bf16.gmra.mxu0 %v2189
        %v2271 = vpop.f32.mrf.mxu0
        %v2272 = vadd.f32 %v1859, %v2271
        %v2273 = vpop.f32.mrf.mxu0
        %v2274 = vadd.f32 %v1859, %v2273
        %2275 = vmatmul.bf16.gmra.mxu0 %v2192
        %v2276 = vpop.f32.mrf.mxu0
        %v2277 = vadd.f32 %v1859, %v2276
        %v2278 = vpop.f32.mrf.mxu0
        %v2279 = vadd.f32 %v1859, %v2278
        %2280 = vmatmul.bf16.gmra.mxu0 %v2195
        %v2281 = vpop.f32.mrf.mxu0
        %v2282 = vadd.f32 %v1859, %v2281
        %v2283 = vpop.f32.mrf.mxu0
        %v2284 = vadd.f32 %v1859, %v2283
        %2285 = vdwg.mxu0
        %v2286 = vmax.f32 %v2207, 0.0
        %v2287 = vmax.f32 %v2209, 0.0
        %v2288 = vmax.f32 %v2212, 0.0
        %v2289 = vmax.f32 %v2214, 0.0
        %v2290 = vmax.f32 %v2217, 0.0
        %v2291 = vmax.f32 %v2219, 0.0
        %v2292 = vmax.f32 %v2222, 0.0
        %v2293 = vmax.f32 %v2224, 0.0
        %v2294 = vmax.f32 %v2227, 0.0
        %v2295 = vmax.f32 %v2229, 0.0
        %v2296 = vmax.f32 %v2232, 0.0
        %v2297 = vmax.f32 %v2234, 0.0
        %v2298 = vmax.f32 %v2237, 0.0
        %v2299 = vmax.f32 %v2239, 0.0
        %v2300 = vmax.f32 %v2242, 0.0
        %v2301 = vmax.f32 %v2244, 0.0
        %v2302 = vmax.f32 %v2247, 0.0
        %v2303 = vmax.f32 %v2249, 0.0
        %v2304 = vmax.f32 %v2252, 0.0
        %v2305 = vmax.f32 %v2254, 0.0
        %v2306 = vmax.f32 %v2257, 0.0
        %v2307 = vmax.f32 %v2259, 0.0
        %v2308 = vmax.f32 %v2262, 0.0
        %v2309 = vmax.f32 %v2264, 0.0
        %v2310 = vmax.f32 %v2267, 0.0
        %v2311 = vmax.f32 %v2269, 0.0
        %v2312 = vmax.f32 %v2272, 0.0
        %v2313 = vmax.f32 %v2274, 0.0
        %v2314 = vmax.f32 %v2277, 0.0
        %v2315 = vmax.f32 %v2279, 0.0
        %v2316 = vmax.f32 %v2282, 0.0
        %v2317 = vmax.f32 %v2284, 0.0
        %2318 = vst.msk [vmem:[%s271] sm:$0xff] %vm410, %v2085
        %2319 = vst.msk [vmem:[%s271 + $0x8] sm:$0xff] %vm410, %v2086
        %2320 = vst.msk [vmem:[%s271 + $0x20] sm:$0xff] %vm410, %v2087
        %2321 = vst.msk [vmem:[%s271 + $0x28] sm:$0xff] %vm410, %v2088
        %2322 = vst.msk [vmem:[%s271 + $0x40] sm:$0xff] %vm410, %v2089
        %2323 = vst.msk [vmem:[%s271 + $0x48] sm:$0xff] %vm410, %v2090
        %2324 = vst.msk [vmem:[%s271 + $0x60] sm:$0xff] %vm410, %v2091
        %2325 = vst.msk [vmem:[%s271 + $0x68] sm:$0xff] %vm410, %v2092
        %2326 = vst.msk [vmem:[%s271 + $0x80] sm:$0xff] %vm410, %v2093
        %2327 = vst.msk [vmem:[%s271 + $0x88] sm:$0xff] %vm410, %v2094
        %2328 = vst.msk [vmem:[%s271 + $0xa0] sm:$0xff] %vm410, %v2095
        %2329 = vst.msk [vmem:[%s271 + $0xa8] sm:$0xff] %vm410, %v2096
        %2330 = vst.msk [vmem:[%s271 + $0xc0] sm:$0xff] %vm410, %v2097
        %2331 = vst.msk [vmem:[%s271 + $0xc8] sm:$0xff] %vm410, %v2098
        %2332 = vst.msk [vmem:[%s271 + $0xe0] sm:$0xff] %vm410, %v2099
        %2333 = vst.msk [vmem:[%s271 + $0xe8] sm:$0xff] %vm410, %v2100
        %2334 = vst.msk [vmem:[%s271 + $0x100] sm:$0xff] %vm410, %v2101
        %2335 = vst.msk [vmem:[%s271 + $0x108] sm:$0xff] %vm410, %v2102
        %2336 = vst.msk [vmem:[%s271 + $0x120] sm:$0xff] %vm410, %v2103
        %2337 = vst.msk [vmem:[%s271 + $0x128] sm:$0xff] %vm410, %v2104
        %2338 = vst.msk [vmem:[%s271 + $0x140] sm:$0xff] %vm410, %v2105
        %2339 = vst.msk [vmem:[%s271 + $0x148] sm:$0xff] %vm410, %v2106
        %2340 = vst.msk [vmem:[%s271 + $0x160] sm:$0xff] %vm410, %v2107
        %2341 = vst.msk [vmem:[%s271 + $0x168] sm:$0xff] %vm410, %v2108
        %2342 = vst.msk [vmem:[%s271 + $0x180] sm:$0xff] %vm410, %v2109
        %2343 = vst.msk [vmem:[%s271 + $0x188] sm:$0xff] %vm410, %v2110
        %2344 = vst.msk [vmem:[%s271 + $0x1a0] sm:$0xff] %vm410, %v2111
        %2345 = vst.msk [vmem:[%s271 + $0x1a8] sm:$0xff] %vm410, %v2112
        %2346 = vst.msk [vmem:[%s271 + $0x1c0] sm:$0xff] %vm410, %v2113
        %2347 = vst.msk [vmem:[%s271 + $0x1c8] sm:$0xff] %vm410, %v2114
        %2348 = vst.msk [vmem:[%s271 + $0x1e0] sm:$0xff] %vm410, %v2115
        %2349 = vst.msk [vmem:[%s271 + $0x1e8] sm:$0xff] %vm410, %v2116
        %s2350 = scalar_lea.vmem %s271, 16 [#allocation3]
        %2351 = vst.msk [vmem:[%s2350] sm:$0xff] %vm410, %v2286
        %2352 = vst.msk [vmem:[%s2350 + $0x8] sm:$0xff] %vm410, %v2287
        %2353 = vst.msk [vmem:[%s2350 + $0x20] sm:$0xff] %vm410, %v2288
        %2354 = vst.msk [vmem:[%s2350 + $0x28] sm:$0xff] %vm410, %v2289
        %2355 = vst.msk [vmem:[%s2350 + $0x40] sm:$0xff] %vm410, %v2290
        %2356 = vst.msk [vmem:[%s2350 + $0x48] sm:$0xff] %vm410, %v2291
        %2357 = vst.msk [vmem:[%s2350 + $0x60] sm:$0xff] %vm410, %v2292
        %2358 = vst.msk [vmem:[%s2350 + $0x68] sm:$0xff] %vm410, %v2293
        %2359 = vst.msk [vmem:[%s2350 + $0x80] sm:$0xff] %vm410, %v2294
        %2360 = vst.msk [vmem:[%s2350 + $0x88] sm:$0xff] %vm410, %v2295
        %2361 = vst.msk [vmem:[%s2350 + $0xa0] sm:$0xff] %vm410, %v2296
        %2362 = vst.msk [vmem:[%s2350 + $0xa8] sm:$0xff] %vm410, %v2297
        %2363 = vst.msk [vmem:[%s2350 + $0xc0] sm:$0xff] %vm410, %v2298
        %2364 = vst.msk [vmem:[%s2350 + $0xc8] sm:$0xff] %vm410, %v2299
        %2365 = vst.msk [vmem:[%s2350 + $0xe0] sm:$0xff] %vm410, %v2300
        %2366 = vst.msk [vmem:[%s2350 + $0xe8] sm:$0xff] %vm410, %v2301
        %2367 = vst.msk [vmem:[%s2350 + $0x100] sm:$0xff] %vm410, %v2302
        %2368 = vst.msk [vmem:[%s2350 + $0x108] sm:$0xff] %vm410, %v2303
        %2369 = vst.msk [vmem:[%s2350 + $0x120] sm:$0xff] %vm410, %v2304
        %2370 = vst.msk [vmem:[%s2350 + $0x128] sm:$0xff] %vm410, %v2305
        %2371 = vst.msk [vmem:[%s2350 + $0x140] sm:$0xff] %vm410, %v2306
        %2372 = vst.msk [vmem:[%s2350 + $0x148] sm:$0xff] %vm410, %v2307
        %2373 = vst.msk [vmem:[%s2350 + $0x160] sm:$0xff] %vm410, %v2308
        %2374 = vst.msk [vmem:[%s2350 + $0x168] sm:$0xff] %vm410, %v2309
        %2375 = vst.msk [vmem:[%s2350 + $0x180] sm:$0xff] %vm410, %v2310
        %2376 = vst.msk [vmem:[%s2350 + $0x188] sm:$0xff] %vm410, %v2311
        %2377 = vst.msk [vmem:[%s2350 + $0x1a0] sm:$0xff] %vm410, %v2312
        %2378 = vst.msk [vmem:[%s2350 + $0x1a8] sm:$0xff] %vm410, %v2313
        %2379 = vst.msk [vmem:[%s2350 + $0x1c0] sm:$0xff] %vm410, %v2314
        %2380 = vst.msk [vmem:[%s2350 + $0x1c8] sm:$0xff] %vm410, %v2315
        %2381 = vst.msk [vmem:[%s2350 + $0x1e0] sm:$0xff] %vm410, %v2316
        %2382 = vst.msk [vmem:[%s2350 + $0x1e8] sm:$0xff] %vm410, %v2317
        %s2383 = sand.u32 %s181, 1
        %s2384 = scalar_lea.sflag [#allocation4], %s2383
        %s2385 = sand.u32 %s181, 1
        %s2386 = smul.addr %s2385, 512
        %s2387 = scalar_lea.vmem [#allocation3], %s2386
        // Predicated region
        $region49: #{tpu_custom_call.1} parent=47 // pred_check
          %p2388 = pneg %p191
        $region50: #{tpu_custom_call.1} parent=47 // pred_check_branch
          %2390 = sbr.rel (%p2388) target = $region52
        $region51: #{tpu_custom_call.1} parent=47 // pred_region
          %2392 = vsyncadd %s2384, 0
          %s2393 = smul.addr %s21, 64
          %s2394 = smul.addr %s2393, 8
          %s2395 = scalar_lea.hbm %s7, %s2394
          %s2396 = sshll.u32 %s2387, 4
          %s2397 = int_to_ptr.vmem [resolvable:$true] %s2396
          %s2398 = sshll.u32 %s2395, 4
          %s2399 = int_to_ptr.hbm [resolvable:$true] %s2398
          %2404 = dma.vmem_to_hbm [thread:$0]  %s2397, 8192, %s2399, %s2384, 128, 128, 8
        $region52: #{tpu_custom_call.1} parent=47 // pred_fallthru
          _
      $region48: #{tpu_custom_call.1} parent=5 // pred_fallthru
        _
      %p2405 = scmp.le.s32.totalorder 2, %s16
      // Predicated region
      $region53: #{tpu_custom_call.1} parent=5 // pred_check
        %p2406 = pneg %p2405
      $region54: #{tpu_custom_call.1} parent=5 // pred_check_branch
        %2408 = sbr.rel (%p2406) target = $region56
      $region55: #{tpu_custom_call.1} parent=5 // pred_region
        %s2409 = ssub.s32 %s16, 2
        // Predicated region
        $region57: #{tpu_custom_call.1} parent=55 // pred_check
          %p2410 = pneg %p197
        $region58: #{tpu_custom_call.1} parent=55 // pred_check_branch
          %2412 = sbr.rel (%p2410) target = $region60
        $region59: #{tpu_custom_call.1} parent=55 // pred_region
          %s2413 = sand.u32 %s182, 1
          %s2414 = scalar_lea.sflag [#allocation4], %s2413
          %s2415 = sand.u32 %s182, 1
          %s2416 = smul.addr %s2415, 512
          %s2417 = scalar_lea.vmem [#allocation3], %s2416
          %2419 = dma.done %s2414, 8192
        $region60: #{tpu_custom_call.1} parent=55 // pred_fallthru
          _
      $region56: #{tpu_custom_call.1} parent=5 // pred_fallthru
        _
    $region6: #{tpu_custom_call.1} parent=1 // loop_footer
      %s20 = sadd.s32 1, %s16
    $region7: #{tpu_custom_call.1} parent=1 // loop_footer_branch
      %15 = sbr.rel target = $region3
    $region8: #{tpu_custom_call.1} parent=1 // loop_exit
      _
    %2420 = vsyncpa [#allocation4], 1
    %s2421 = scalar_lea.sflag [#allocation4], 1
    %2422 = vsyncpa %s2421, 1

</llo_original>
